<compile_context>
chip_gen: v7x
topology: tpu7x:2x2x1
jax: 0.10.0
libtpu: 0.0.40
codegen_flags: <defaults>
</compile_context>

<pallas_src>
import functools

import jax
import jax.numpy as jnp
from jax.experimental import pallas as pl
from jax.experimental.pallas import tpu as pltpu


# ----------------------------- kernel helpers ------------------------------

def _layernorm(x, w, b, eps=1e-5):
    # LayerNorm statistics in fp32 (matches the fp16-safe LayerNorm subclass).
    xf = x.astype(jnp.float32)
    mu = jnp.mean(xf, axis=-1, keepdims=True)
    var = jnp.mean(jnp.square(xf - mu), axis=-1, keepdims=True)
    y = (xf - mu) * jax.lax.rsqrt(var + eps)
    return y * w + b            # f32, (1, D) params broadcast


def _block_kernel(
    x_ref,                 # (Bb, L, D)
    ln1w_ref, ln1b_ref,    # (1, D) f32
    wqkv_ref, bqkv_ref,    # (D, 3D) bf16 (scale folded into Q cols), (1, 3D) f32
    wo_ref, bo_ref,        # (D, D) bf16, (1, D) f32
    ln2w_ref, ln2b_ref,    # (1, D) f32
    wfc_ref, bfc_ref,      # (D, 4D) bf16, (1, 4D) f32
    wproj_ref, bproj_ref,  # (4D, D) bf16, (1, D) f32
    o_ref,                 # (Bb, L, D)
    *, n_head,
):
    Bb, L, D = x_ref.shape
    hd = D // n_head
    R = Bb * L

    # (Bb, L, D) -> (Bb*L, D): merge leading dims (lane dim untouched).
    x = x_ref[...].reshape(R, D).astype(jnp.float32)

    # ----- attention branch: x + out_proj(MHA(LN1(x))) -----
    xn = _layernorm(x, ln1w_ref[...], ln1b_ref[...])                      # (R, D) f32
    qkv = jnp.dot(xn.astype(jnp.bfloat16), wqkv_ref[...],
                  preferred_element_type=jnp.float32) + bqkv_ref[...]     # (R, 3D) f32

    # Static loop over heads; each iteration is batched over the Bb batch
    # elements (single leading batch dim in the einsums -> clean MXU lowering).
    ctx_parts = []
    for h in range(n_head):
        q_h = qkv[:, h * hd:(h + 1) * hd]
        k_h = qkv[:, D + h * hd:D + (h + 1) * hd]
        v_h = qkv[:, 2 * D + h * hd:2 * D + (h + 1) * hd]
        # (R, hd) -> (Bb, L, hd): leading-dim split only (free).
        q_h = q_h.reshape(Bb, L, hd).astype(jnp.bfloat16)
        k_h = k_h.reshape(Bb, L, hd).astype(jnp.bfloat16)
        v_h = v_h.reshape(Bb, L, hd).astype(jnp.bfloat16)

        s = jnp.einsum("bqe,bke->bqk", q_h, k_h,
                       preferred_element_type=jnp.float32)                # (Bb, L, L)
        s = s - jnp.max(s, axis=-1, keepdims=True)
        p = jnp.exp(s)
        inv = pl.reciprocal(jnp.sum(p, axis=-1, keepdims=True), approx=True)
        ctx = jnp.einsum("bqk,bke->bqe", p.astype(jnp.bfloat16), v_h,
                         preferred_element_type=jnp.float32) * inv        # (Bb, L, hd)
        ctx_parts.append(ctx.reshape(R, hd))

    # Single head-merge (head-major feature order, matches out_proj layout).
    ctx_all = (ctx_parts[0] if n_head == 1
               else jnp.concatenate(ctx_parts, axis=-1))                  # (R, D)
    attn = jnp.dot(ctx_all.astype(jnp.bfloat16), wo_ref[...],
                   preferred_element_type=jnp.float32) + bo_ref[...]
    x = x + attn

    # ----- MLP branch: x + c_proj(QuickGELU(c_fc(LN2(x)))) -----
    xn2 = _layernorm(x, ln2w_ref[...], ln2b_ref[...])
    hf = jnp.dot(xn2.astype(jnp.bfloat16), wfc_ref[...],
                 preferred_element_type=jnp.float32) + bfc_ref[...]       # (R, 4D)
    hf = hf * jax.nn.sigmoid(1.702 * hf)                                  # QuickGELU, f32
    hp = jnp.dot(hf.astype(jnp.bfloat16), wproj_ref[...],
                 preferred_element_type=jnp.float32) + bproj_ref[...]
    x = x + hp

    o_ref[...] = x.reshape(Bb, L, D).astype(o_ref.dtype)


# ------------------------------ wrapper ------------------------------------

def _tpu_vmem_capacity_bytes():
    try:
        return int(pltpu.get_tpu_info().vmem_capacity_bytes)
    except Exception:
        return 64 << 20        # conservative: v7x per-TensorCore VMEM


def _pick_batch_block(N, L, target_rows, min_steps):
    """Largest divisor Bb of N with Bb*L <= target_rows, preferring at least
    `min_steps` grid steps (and an even step count when min_steps >= 4 so the
    two v7x TensorCores stay balanced and pipelined)."""
    divisors = [bb for bb in range(1, N + 1) if N % bb == 0]
    fits = [bb for bb in divisors if bb * L <= target_rows] or [1]
    good = [bb for bb in fits if N // bb >= min_steps]
    if min_steps >= 4:
        even = [bb for bb in good if (N // bb) % 2 == 0]
        if even:
            good = even
    pool = good if good else fits
    return max(pool)


def residual_attention_block(x_in, params, n_head, *,
                             compute_dtype=jnp.bfloat16, batch_block=None,
                             input_layout="lnd"):
    """Forward pass of ResidualAttentionBlock.

    input_layout="lnd": x_in is (L, N, D) like the PyTorch module (default).
    input_layout="nld": x_in is already (N, L, D); skips both HBM transposes.
    """
    if input_layout == "lnd":
        L, N, D = x_in.shape
        x = jnp.transpose(x_in, (1, 0, 2))          # (N, L, D)
    elif input_layout == "nld":
        N, L, D = x_in.shape
        x = x_in
    else:
        raise ValueError(input_layout)
    assert D % n_head == 0
    hd = D // n_head
    f32 = jnp.float32

    # Generation-aware blocking: smaller row blocks + >=4 grid steps on
    # v7x-class chips (<=64 MiB VMEM, 2 TCs), larger blocks on v5e/v6e.
    vmem_cap = _tpu_vmem_capacity_bytes()
    if vmem_cap <= (64 << 20):
        target_rows, min_steps = 256, 4
    else:
        target_rows, min_steps = 512, 2

    Bb = (batch_block if batch_block is not None
          else _pick_batch_block(N, L, target_rows, min_steps))
    assert N % Bb == 0

    # --- one-time weight layout prep: transpose, fold Q scale, cast to bf16 ---
    scale = 1.0 / (float(hd) ** 0.5)
    col_scale = jnp.concatenate(
        [jnp.full((D,), scale, f32), jnp.ones((2 * D,), f32)])

    wqkv_t = (params["wqkv"].astype(f32).T * col_scale[None, :]).astype(compute_dtype)
    bqkv = (params["bqkv"].astype(f32) * col_scale).reshape(1, 3 * D)
    wo_t = params["wo"].astype(f32).T.astype(compute_dtype)
    bo = params["bo"].astype(f32).reshape(1, D)
    wfc_t = params["wfc"].astype(f32).T.astype(compute_dtype)
    bfc = params["bfc"].astype(f32).reshape(1, 4 * D)
    wproj_t = params["wproj"].astype(f32).T.astype(compute_dtype)
    bproj = params["bproj"].astype(f32).reshape(1, D)
    ln1w = params["ln1w"].astype(f32).reshape(1, D)
    ln1b = params["ln1b"].astype(f32).reshape(1, D)
    ln2w = params["ln2w"].astype(f32).reshape(1, D)
    ln2b = params["ln2b"].astype(f32).reshape(1, D)

    weights = (ln1w, ln1b, wqkv_t, bqkv, wo_t, bo,
               ln2w, ln2b, wfc_t, bfc, wproj_t, bproj)

    # Grid-invariant weights: whole-array VMEM residents (single buffer,
    # no per-step DMA / double-buffering).
    weight_spec = pl.BlockSpec(memory_space=pltpu.MemorySpace.VMEM)
    in_specs = ([pl.BlockSpec((Bb, L, D), lambda i: (i, 0, 0))]
                + [weight_spec] * len(weights))

    # Explicit VMEM budget clamped to ~85% of the chip's physical per-core
    # VMEM (64 MiB on v7x, 128 MiB on v5e/v6e).
    weight_bytes = sum(int(w.size) * w.dtype.itemsize for w in weights)
    act_bytes = Bb * L * (28 * D) * 4 + Bb * L * L * 8
    io_bytes = 2 * 2 * Bb * L * D * x.dtype.itemsize      # double-buffered x/o tiles
    vmem_limit = int(min(int(0.85 * vmem_cap),
                         max(32 << 20, 2 * (weight_bytes + act_bytes + io_bytes))))

    # Advisory cost estimate so XLA overlaps the surrounding ops (transposes,
    # weight casts) with the custom call.
    flops = 2 * N * L * D * (3 * D + D + 4 * D + 4 * D) + 4 * N * L * L * D
    transcendentals = N * n_head * L * L + N * L * 4 * D
    bytes_accessed = 2 * N * L * D * x.dtype.itemsize + weight_bytes
    cost = pl.CostEstimate(flops=flops, transcendentals=transcendentals,
                           bytes_accessed=bytes_accessed)

    out = pl.pallas_call(
        functools.partial(_block_kernel, n_head=n_head),
        out_shape=jax.ShapeDtypeStruct((N, L, D), x.dtype),
        grid=(N // Bb,),
        in_specs=in_specs,
        out_specs=pl.BlockSpec((Bb, L, D), lambda i: (i, 0, 0)),
        compiler_params=pltpu.CompilerParams(
            dimension_semantics=("parallel",),
            vmem_limit_bytes=vmem_limit),
        cost_estimate=cost,
    )(x, *weights)

    if input_layout == "lnd":
        return jnp.transpose(out, (1, 0, 2))       # back to (L, N, D)
    return out


# ------------------------- pure-JAX reference ------------------------------

def reference_block(x_lnd, p, n_head):
    L, N, D = x_lnd.shape
    hd = D // n_head

    def ln(x, w, b):
        mu = x.mean(-1, keepdims=True)
        var = ((x - mu) ** 2).mean(-1, keepdims=True)
        return (x - mu) / jnp.sqrt(var + 1e-5) * w + b

    x = x_lnd
    h = ln(x, p["ln1w"], p["ln1b"])
    qkv = jnp.einsum("lnd,ed->lne", h, p["wqkv"]) + p["bqkv"]
    q, k, v = jnp.split(qkv, 3, axis=-1)
    q = q.reshape(L, N, n_head, hd) * (1.0 / (hd ** 0.5))
    k = k.reshape(L, N, n_head, hd)
    v = v.reshape(L, N, n_head, hd)
    logits = jnp.einsum("qnhd,knhd->nhqk", q, k)
    pr = jax.nn.softmax(logits, axis=-1)
    ao = jnp.einsum("nhqk,knhd->qnhd", pr, v).reshape(L, N, D)
    ao = jnp.einsum("lnd,ed->lne", ao, p["wo"]) + p["bo"]
    x = x + ao
    h2 = ln(x, p["ln2w"], p["ln2b"])
    hf = jnp.einsum("lnd,ed->lne", h2, p["wfc"]) + p["bfc"]
    hf = hf * jax.nn.sigmoid(1.702 * hf)
    hp = jnp.einsum("lnd,ed->lne", hf, p["wproj"]) + p["bproj"]
    return x + hp


# --------------------------------- main -------------------------------------

if __name__ == "__main__":
    L, N, D, n_head = 8, 4, 32, 4  # seq, batch, d_model, heads

    key = jax.random.PRNGKey(0)
    keys = jax.random.split(key, 16)

    params = {
        "ln1w": jnp.ones((D,), jnp.float32) + 0.01 * jax.random.normal(keys[0], (D,)),
        "ln1b": 0.02 * jax.random.normal(keys[1], (D,)),
        "wqkv": 0.05 * jax.random.normal(keys[2], (3 * D, D)),
        "bqkv": 0.02 * jax.random.normal(keys[3], (3 * D,)),
        "wo": 0.05 * jax.random.normal(keys[4], (D, D)),
        "bo": 0.02 * jax.random.normal(keys[5], (D,)),
        "ln2w": jnp.ones((D,), jnp.float32) + 0.01 * jax.random.normal(keys[6], (D,)),
        "ln2b": 0.02 * jax.random.normal(keys[7], (D,)),
        "wfc": 0.05 * jax.random.normal(keys[8], (4 * D, D)),
        "bfc": 0.02 * jax.random.normal(keys[9], (4 * D,)),
        "wproj": 0.05 * jax.random.normal(keys[10], (D, 4 * D)),
        "bproj": 0.02 * jax.random.normal(keys[11], (D,)),
    }
    params = {k: v.astype(jnp.float32) for k, v in params.items()}

    x = jax.random.normal(keys[12], (L, N, D), jnp.float32)

    out = jax.block_until_ready(residual_attention_block(x, params, n_head))
    ref = reference_block(x, params, n_head)

    assert out.shape == (L, N, D)
    max_err = float(jnp.max(jnp.abs(out - ref)))
    # bf16 MXU operands + approx reciprocal -> relaxed tolerance vs. f32 reference
    assert max_err < 2e-2, max_err

    print("KERNEL_OK")
</pallas_src>

<mosaic_0001>
module attributes {stable_mosaic.version = 11 : i64} {
  func.func @_block_kernel(%arg0: i32, %arg1: memref<1x8x32xf32, #tpu.memory_space<vmem>>, %arg2: memref<1x32xf32, #tpu.memory_space<vmem>>, %arg3: memref<1x32xf32, #tpu.memory_space<vmem>>, %arg4: memref<32x96xbf16, #tpu.memory_space<vmem>>, %arg5: memref<1x96xf32, #tpu.memory_space<vmem>>, %arg6: memref<32x32xbf16, #tpu.memory_space<vmem>>, %arg7: memref<1x32xf32, #tpu.memory_space<vmem>>, %arg8: memref<1x32xf32, #tpu.memory_space<vmem>>, %arg9: memref<1x32xf32, #tpu.memory_space<vmem>>, %arg10: memref<32x128xbf16, #tpu.memory_space<vmem>>, %arg11: memref<1x128xf32, #tpu.memory_space<vmem>>, %arg12: memref<128x32xbf16, #tpu.memory_space<vmem>>, %arg13: memref<1x32xf32, #tpu.memory_space<vmem>>, %arg14: memref<1x8x32xf32, #tpu.memory_space<vmem>>) attributes {dimension_semantics = [#tpu.dimension_semantics<parallel>], iteration_bounds = array<i64: 4>, scalar_prefetch = 0 : i64, scratch_operands = 0 : i64, tpu.core_type = #tpu.core_type<tc>, window_params = [{transform_indices = @transform_0, window_bounds = array<i64: 1, 8, 32>}, {pipeline_mode = #tpu.pipeline_mode<synchronous>, transform_indices = @transform_1, window_bounds = array<i64: 1, 32>}, {pipeline_mode = #tpu.pipeline_mode<synchronous>, transform_indices = @transform_2, window_bounds = array<i64: 1, 32>}, {pipeline_mode = #tpu.pipeline_mode<synchronous>, transform_indices = @transform_3, window_bounds = array<i64: 32, 96>}, {pipeline_mode = #tpu.pipeline_mode<synchronous>, transform_indices = @transform_4, window_bounds = array<i64: 1, 96>}, {pipeline_mode = #tpu.pipeline_mode<synchronous>, transform_indices = @transform_5, window_bounds = array<i64: 32, 32>}, {pipeline_mode = #tpu.pipeline_mode<synchronous>, transform_indices = @transform_6, window_bounds = array<i64: 1, 32>}, {pipeline_mode = #tpu.pipeline_mode<synchronous>, transform_indices = @transform_7, window_bounds = array<i64: 1, 32>}, {pipeline_mode = #tpu.pipeline_mode<synchronous>, transform_indices = @transform_8, window_bounds = array<i64: 1, 32>}, {pipeline_mode = #tpu.pipeline_mode<synchronous>, transform_indices = @transform_9, window_bounds = array<i64: 32, 128>}, {pipeline_mode = #tpu.pipeline_mode<synchronous>, transform_indices = @transform_10, window_bounds = array<i64: 1, 128>}, {pipeline_mode = #tpu.pipeline_mode<synchronous>, transform_indices = @transform_11, window_bounds = array<i64: 128, 32>}, {pipeline_mode = #tpu.pipeline_mode<synchronous>, transform_indices = @transform_12, window_bounds = array<i64: 1, 32>}, {transform_indices = @transform_13, window_bounds = array<i64: 1, 8, 32>}]} {
    %c0 = arith.constant 0 : index
    %c0_0 = arith.constant 0 : index
    %c0_1 = arith.constant 0 : index
    %0 = vector.load %arg1[%c0, %c0_0, %c0_1] : memref<1x8x32xf32, #tpu.memory_space<vmem>>, vector<1x8x32xf32>
    %1 = vector.shape_cast %0 : vector<1x8x32xf32> to vector<8x32xf32>
    %c0_2 = arith.constant 0 : index
    %c0_3 = arith.constant 0 : index
    %2 = vector.load %arg2[%c0_2, %c0_3] : memref<1x32xf32, #tpu.memory_space<vmem>>, vector<1x32xf32>
    %c0_4 = arith.constant 0 : index
    %c0_5 = arith.constant 0 : index
    %3 = vector.load %arg3[%c0_4, %c0_5] : memref<1x32xf32, #tpu.memory_space<vmem>>, vector<1x32xf32>
    %cst = arith.constant dense<0.000000e+00> : vector<8xf32>
    %4 = vector.multi_reduction <add>, %1, %cst [1] : vector<8x32xf32> to vector<8xf32>
    %5 = vector.shape_cast %4 : vector<8xf32> to vector<8x1xf32>
    %cst_6 = arith.constant 3.200000e+01 : f32
    %6 = vector.broadcast %cst_6 : f32 to vector<8x1xf32>
    %7 = arith.divf %5, %6 : vector<8x1xf32>
    %8 = vector.broadcast %7 : vector<8x1xf32> to vector<8x32xf32>
    %9 = arith.subf %1, %8 : vector<8x32xf32>
    %10 = arith.mulf %9, %9 : vector<8x32xf32>
    %cst_7 = arith.constant dense<0.000000e+00> : vector<8xf32>
    %11 = vector.multi_reduction <add>, %10, %cst_7 [1] : vector<8x32xf32> to vector<8xf32>
    %12 = vector.shape_cast %11 : vector<8xf32> to vector<8x1xf32>
    %cst_8 = arith.constant 3.200000e+01 : f32
    %13 = vector.broadcast %cst_8 : f32 to vector<8x1xf32>
    %14 = arith.divf %12, %13 : vector<8x1xf32>
    %15 = vector.broadcast %7 : vector<8x1xf32> to vector<8x32xf32>
    %16 = arith.subf %1, %15 : vector<8x32xf32>
    %cst_9 = arith.constant 9.99999974E-6 : f32
    %17 = vector.broadcast %cst_9 : f32 to vector<8x1xf32>
    %18 = arith.addf %14, %17 : vector<8x1xf32>
    %19 = math.rsqrt %18 : vector<8x1xf32>
    %20 = vector.broadcast %19 : vector<8x1xf32> to vector<8x32xf32>
    %21 = arith.mulf %16, %20 : vector<8x32xf32>
    %22 = vector.broadcast %2 : vector<1x32xf32> to vector<8x32xf32>
    %23 = arith.mulf %21, %22 : vector<8x32xf32>
    %24 = vector.broadcast %3 : vector<1x32xf32> to vector<8x32xf32>
    %25 = arith.addf %23, %24 : vector<8x32xf32>
    %26 = arith.truncf %25 : vector<8x32xf32> to vector<8x32xbf16>
    %c0_10 = arith.constant 0 : index
    %c0_11 = arith.constant 0 : index
    %27 = vector.load %arg4[%c0_10, %c0_11] : memref<32x96xbf16, #tpu.memory_space<vmem>>, vector<32x96xbf16>
    %cst_12 = arith.constant dense<0.000000e+00> : vector<8x96xf32>
    %28 = tpu.matmul %26, %27, %cst_12 {dimension_numbers = #tpu.dot_dimension_numbers<[1], [0], [0], [1], [0, 0, 1, 1], [], []>} : vector<8x32xbf16>, vector<32x96xbf16>, vector<8x96xf32> -> vector<8x96xf32>
    %c0_13 = arith.constant 0 : index
    %c0_14 = arith.constant 0 : index
    %29 = vector.load %arg5[%c0_13, %c0_14] : memref<1x96xf32, #tpu.memory_space<vmem>>, vector<1x96xf32>
    %30 = vector.broadcast %29 : vector<1x96xf32> to vector<8x96xf32>
    %31 = arith.addf %28, %30 : vector<8x96xf32>
    %32 = vector.extract_strided_slice %31 {offsets = [0, 0], sizes = [8, 8], strides = [1, 1]} : vector<8x96xf32> to vector<8x8xf32>
    %33 = vector.extract_strided_slice %31 {offsets = [0, 32], sizes = [8, 8], strides = [1, 1]} : vector<8x96xf32> to vector<8x8xf32>
    %34 = vector.extract_strided_slice %31 {offsets = [0, 64], sizes = [8, 8], strides = [1, 1]} : vector<8x96xf32> to vector<8x8xf32>
    %35 = vector.shape_cast %32 : vector<8x8xf32> to vector<1x8x8xf32>
    %36 = arith.truncf %35 : vector<1x8x8xf32> to vector<1x8x8xbf16>
    %37 = vector.shape_cast %33 : vector<8x8xf32> to vector<1x8x8xf32>
    %38 = arith.truncf %37 : vector<1x8x8xf32> to vector<1x8x8xbf16>
    %39 = vector.shape_cast %34 : vector<8x8xf32> to vector<1x8x8xf32>
    %40 = arith.truncf %39 : vector<1x8x8xf32> to vector<1x8x8xbf16>
    "tpu.trace_start"() <{level = 10 : i32, message = "bqe,bke->bqk"}> : () -> ()
    %cst_15 = arith.constant dense<0.000000e+00> : vector<1x8x8xf32>
    %41 = tpu.matmul %36, %38, %cst_15 {dimension_numbers = #tpu.dot_dimension_numbers<[2], [2], [1], [1], [0, 0, 0, 1, 1, 1], [0], [0]>} : vector<1x8x8xbf16>, vector<1x8x8xbf16>, vector<1x8x8xf32> -> vector<1x8x8xf32>
    "tpu.trace_stop"() : () -> ()
    %cst_16 = arith.constant dense<0xFF800000> : vector<1x8xf32>
    %42 = vector.multi_reduction <maximumf>, %41, %cst_16 [2] : vector<1x8x8xf32> to vector<1x8xf32>
    %43 = vector.shape_cast %42 : vector<1x8xf32> to vector<1x8x1xf32>
    %44 = vector.broadcast %43 : vector<1x8x1xf32> to vector<1x8x8xf32>
    %45 = arith.subf %41, %44 : vector<1x8x8xf32>
    %46 = math.exp %45 : vector<1x8x8xf32>
    %cst_17 = arith.constant dense<0.000000e+00> : vector<1x8xf32>
    %47 = vector.multi_reduction <add>, %46, %cst_17 [2] : vector<1x8x8xf32> to vector<1x8xf32>
    %48 = vector.shape_cast %47 : vector<1x8xf32> to vector<1x8x1xf32>
    %49 = tpu.reciprocal %48 {approx = true} : vector<1x8x1xf32> -> vector<1x8x1xf32>
    %50 = arith.truncf %46 : vector<1x8x8xf32> to vector<1x8x8xbf16>
    "tpu.trace_start"() <{level = 10 : i32, message = "bqk,bke->bqe"}> : () -> ()
    %cst_18 = arith.constant dense<0.000000e+00> : vector<1x8x8xf32>
    %51 = tpu.matmul %50, %40, %cst_18 {dimension_numbers = #tpu.dot_dimension_numbers<[2], [1], [1], [2], [0, 0, 0, 1, 1, 2], [0], [0]>} : vector<1x8x8xbf16>, vector<1x8x8xbf16>, vector<1x8x8xf32> -> vector<1x8x8xf32>
    "tpu.trace_stop"() : () -> ()
    %52 = vector.broadcast %49 : vector<1x8x1xf32> to vector<1x8x8xf32>
    %53 = arith.mulf %51, %52 : vector<1x8x8xf32>
    %54 = vector.shape_cast %53 : vector<1x8x8xf32> to vector<8x8xf32>
    %55 = vector.extract_strided_slice %31 {offsets = [0, 8], sizes = [8, 8], strides = [1, 1]} : vector<8x96xf32> to vector<8x8xf32>
    %56 = vector.extract_strided_slice %31 {offsets = [0, 40], sizes = [8, 8], strides = [1, 1]} : vector<8x96xf32> to vector<8x8xf32>
    %57 = vector.extract_strided_slice %31 {offsets = [0, 72], sizes = [8, 8], strides = [1, 1]} : vector<8x96xf32> to vector<8x8xf32>
    %58 = vector.shape_cast %55 : vector<8x8xf32> to vector<1x8x8xf32>
    %59 = arith.truncf %58 : vector<1x8x8xf32> to vector<1x8x8xbf16>
    %60 = vector.shape_cast %56 : vector<8x8xf32> to vector<1x8x8xf32>
    %61 = arith.truncf %60 : vector<1x8x8xf32> to vector<1x8x8xbf16>
    %62 = vector.shape_cast %57 : vector<8x8xf32> to vector<1x8x8xf32>
    %63 = arith.truncf %62 : vector<1x8x8xf32> to vector<1x8x8xbf16>
    "tpu.trace_start"() <{level = 10 : i32, message = "bqe,bke->bqk"}> : () -> ()
    %cst_19 = arith.constant dense<0.000000e+00> : vector<1x8x8xf32>
    %64 = tpu.matmul %59, %61, %cst_19 {dimension_numbers = #tpu.dot_dimension_numbers<[2], [2], [1], [1], [0, 0, 0, 1, 1, 1], [0], [0]>} : vector<1x8x8xbf16>, vector<1x8x8xbf16>, vector<1x8x8xf32> -> vector<1x8x8xf32>
    "tpu.trace_stop"() : () -> ()
    %cst_20 = arith.constant dense<0xFF800000> : vector<1x8xf32>
    %65 = vector.multi_reduction <maximumf>, %64, %cst_20 [2] : vector<1x8x8xf32> to vector<1x8xf32>
    %66 = vector.shape_cast %65 : vector<1x8xf32> to vector<1x8x1xf32>
    %67 = vector.broadcast %66 : vector<1x8x1xf32> to vector<1x8x8xf32>
    %68 = arith.subf %64, %67 : vector<1x8x8xf32>
    %69 = math.exp %68 : vector<1x8x8xf32>
    %cst_21 = arith.constant dense<0.000000e+00> : vector<1x8xf32>
    %70 = vector.multi_reduction <add>, %69, %cst_21 [2] : vector<1x8x8xf32> to vector<1x8xf32>
    %71 = vector.shape_cast %70 : vector<1x8xf32> to vector<1x8x1xf32>
    %72 = tpu.reciprocal %71 {approx = true} : vector<1x8x1xf32> -> vector<1x8x1xf32>
    %73 = arith.truncf %69 : vector<1x8x8xf32> to vector<1x8x8xbf16>
    "tpu.trace_start"() <{level = 10 : i32, message = "bqk,bke->bqe"}> : () -> ()
    %cst_22 = arith.constant dense<0.000000e+00> : vector<1x8x8xf32>
    %74 = tpu.matmul %73, %63, %cst_22 {dimension_numbers = #tpu.dot_dimension_numbers<[2], [1], [1], [2], [0, 0, 0, 1, 1, 2], [0], [0]>} : vector<1x8x8xbf16>, vector<1x8x8xbf16>, vector<1x8x8xf32> -> vector<1x8x8xf32>
    "tpu.trace_stop"() : () -> ()
    %75 = vector.broadcast %72 : vector<1x8x1xf32> to vector<1x8x8xf32>
    %76 = arith.mulf %74, %75 : vector<1x8x8xf32>
    %77 = vector.shape_cast %76 : vector<1x8x8xf32> to vector<8x8xf32>
    %78 = vector.extract_strided_slice %31 {offsets = [0, 16], sizes = [8, 8], strides = [1, 1]} : vector<8x96xf32> to vector<8x8xf32>
    %79 = vector.extract_strided_slice %31 {offsets = [0, 48], sizes = [8, 8], strides = [1, 1]} : vector<8x96xf32> to vector<8x8xf32>
    %80 = vector.extract_strided_slice %31 {offsets = [0, 80], sizes = [8, 8], strides = [1, 1]} : vector<8x96xf32> to vector<8x8xf32>
    %81 = vector.shape_cast %78 : vector<8x8xf32> to vector<1x8x8xf32>
    %82 = arith.truncf %81 : vector<1x8x8xf32> to vector<1x8x8xbf16>
    %83 = vector.shape_cast %79 : vector<8x8xf32> to vector<1x8x8xf32>
    %84 = arith.truncf %83 : vector<1x8x8xf32> to vector<1x8x8xbf16>
    %85 = vector.shape_cast %80 : vector<8x8xf32> to vector<1x8x8xf32>
    %86 = arith.truncf %85 : vector<1x8x8xf32> to vector<1x8x8xbf16>
    "tpu.trace_start"() <{level = 10 : i32, message = "bqe,bke->bqk"}> : () -> ()
    %cst_23 = arith.constant dense<0.000000e+00> : vector<1x8x8xf32>
    %87 = tpu.matmul %82, %84, %cst_23 {dimension_numbers = #tpu.dot_dimension_numbers<[2], [2], [1], [1], [0, 0, 0, 1, 1, 1], [0], [0]>} : vector<1x8x8xbf16>, vector<1x8x8xbf16>, vector<1x8x8xf32> -> vector<1x8x8xf32>
    "tpu.trace_stop"() : () -> ()
    %cst_24 = arith.constant dense<0xFF800000> : vector<1x8xf32>
    %88 = vector.multi_reduction <maximumf>, %87, %cst_24 [2] : vector<1x8x8xf32> to vector<1x8xf32>
    %89 = vector.shape_cast %88 : vector<1x8xf32> to vector<1x8x1xf32>
    %90 = vector.broadcast %89 : vector<1x8x1xf32> to vector<1x8x8xf32>
    %91 = arith.subf %87, %90 : vector<1x8x8xf32>
    %92 = math.exp %91 : vector<1x8x8xf32>
    %cst_25 = arith.constant dense<0.000000e+00> : vector<1x8xf32>
    %93 = vector.multi_reduction <add>, %92, %cst_25 [2] : vector<1x8x8xf32> to vector<1x8xf32>
    %94 = vector.shape_cast %93 : vector<1x8xf32> to vector<1x8x1xf32>
    %95 = tpu.reciprocal %94 {approx = true} : vector<1x8x1xf32> -> vector<1x8x1xf32>
    %96 = arith.truncf %92 : vector<1x8x8xf32> to vector<1x8x8xbf16>
    "tpu.trace_start"() <{level = 10 : i32, message = "bqk,bke->bqe"}> : () -> ()
    %cst_26 = arith.constant dense<0.000000e+00> : vector<1x8x8xf32>
    %97 = tpu.matmul %96, %86, %cst_26 {dimension_numbers = #tpu.dot_dimension_numbers<[2], [1], [1], [2], [0, 0, 0, 1, 1, 2], [0], [0]>} : vector<1x8x8xbf16>, vector<1x8x8xbf16>, vector<1x8x8xf32> -> vector<1x8x8xf32>
    "tpu.trace_stop"() : () -> ()
    %98 = vector.broadcast %95 : vector<1x8x1xf32> to vector<1x8x8xf32>
    %99 = arith.mulf %97, %98 : vector<1x8x8xf32>
    %100 = vector.shape_cast %99 : vector<1x8x8xf32> to vector<8x8xf32>
    %101 = vector.extract_strided_slice %31 {offsets = [0, 24], sizes = [8, 8], strides = [1, 1]} : vector<8x96xf32> to vector<8x8xf32>
    %102 = vector.extract_strided_slice %31 {offsets = [0, 56], sizes = [8, 8], strides = [1, 1]} : vector<8x96xf32> to vector<8x8xf32>
    %103 = vector.extract_strided_slice %31 {offsets = [0, 88], sizes = [8, 8], strides = [1, 1]} : vector<8x96xf32> to vector<8x8xf32>
    %104 = vector.shape_cast %101 : vector<8x8xf32> to vector<1x8x8xf32>
    %105 = arith.truncf %104 : vector<1x8x8xf32> to vector<1x8x8xbf16>
    %106 = vector.shape_cast %102 : vector<8x8xf32> to vector<1x8x8xf32>
    %107 = arith.truncf %106 : vector<1x8x8xf32> to vector<1x8x8xbf16>
    %108 = vector.shape_cast %103 : vector<8x8xf32> to vector<1x8x8xf32>
    %109 = arith.truncf %108 : vector<1x8x8xf32> to vector<1x8x8xbf16>
    "tpu.trace_start"() <{level = 10 : i32, message = "bqe,bke->bqk"}> : () -> ()
    %cst_27 = arith.constant dense<0.000000e+00> : vector<1x8x8xf32>
    %110 = tpu.matmul %105, %107, %cst_27 {dimension_numbers = #tpu.dot_dimension_numbers<[2], [2], [1], [1], [0, 0, 0, 1, 1, 1], [0], [0]>} : vector<1x8x8xbf16>, vector<1x8x8xbf16>, vector<1x8x8xf32> -> vector<1x8x8xf32>
    "tpu.trace_stop"() : () -> ()
    %cst_28 = arith.constant dense<0xFF800000> : vector<1x8xf32>
    %111 = vector.multi_reduction <maximumf>, %110, %cst_28 [2] : vector<1x8x8xf32> to vector<1x8xf32>
    %112 = vector.shape_cast %111 : vector<1x8xf32> to vector<1x8x1xf32>
    %113 = vector.broadcast %112 : vector<1x8x1xf32> to vector<1x8x8xf32>
    %114 = arith.subf %110, %113 : vector<1x8x8xf32>
    %115 = math.exp %114 : vector<1x8x8xf32>
    %cst_29 = arith.constant dense<0.000000e+00> : vector<1x8xf32>
    %116 = vector.multi_reduction <add>, %115, %cst_29 [2] : vector<1x8x8xf32> to vector<1x8xf32>
    %117 = vector.shape_cast %116 : vector<1x8xf32> to vector<1x8x1xf32>
    %118 = tpu.reciprocal %117 {approx = true} : vector<1x8x1xf32> -> vector<1x8x1xf32>
    %119 = arith.truncf %115 : vector<1x8x8xf32> to vector<1x8x8xbf16>
    "tpu.trace_start"() <{level = 10 : i32, message = "bqk,bke->bqe"}> : () -> ()
    %cst_30 = arith.constant dense<0.000000e+00> : vector<1x8x8xf32>
    %120 = tpu.matmul %119, %109, %cst_30 {dimension_numbers = #tpu.dot_dimension_numbers<[2], [1], [1], [2], [0, 0, 0, 1, 1, 2], [0], [0]>} : vector<1x8x8xbf16>, vector<1x8x8xbf16>, vector<1x8x8xf32> -> vector<1x8x8xf32>
    "tpu.trace_stop"() : () -> ()
    %121 = vector.broadcast %118 : vector<1x8x1xf32> to vector<1x8x8xf32>
    %122 = arith.mulf %120, %121 : vector<1x8x8xf32>
    %123 = vector.shape_cast %122 : vector<1x8x8xf32> to vector<8x8xf32>
    %124 = tpu.concatenate %54, %77, %100, %123 in 1 : vector<8x8xf32>, vector<8x8xf32>, vector<8x8xf32>, vector<8x8xf32> -> vector<8x32xf32>
    %125 = arith.truncf %124 : vector<8x32xf32> to vector<8x32xbf16>
    %c0_31 = arith.constant 0 : index
    %c0_32 = arith.constant 0 : index
    %126 = vector.load %arg6[%c0_31, %c0_32] : memref<32x32xbf16, #tpu.memory_space<vmem>>, vector<32x32xbf16>
    %cst_33 = arith.constant dense<0.000000e+00> : vector<8x32xf32>
    %127 = tpu.matmul %125, %126, %cst_33 {dimension_numbers = #tpu.dot_dimension_numbers<[1], [0], [0], [1], [0, 0, 1, 1], [], []>} : vector<8x32xbf16>, vector<32x32xbf16>, vector<8x32xf32> -> vector<8x32xf32>
    %c0_34 = arith.constant 0 : index
    %c0_35 = arith.constant 0 : index
    %128 = vector.load %arg7[%c0_34, %c0_35] : memref<1x32xf32, #tpu.memory_space<vmem>>, vector<1x32xf32>
    %129 = vector.broadcast %128 : vector<1x32xf32> to vector<8x32xf32>
    %130 = arith.addf %127, %129 : vector<8x32xf32>
    %131 = arith.addf %1, %130 : vector<8x32xf32>
    %c0_36 = arith.constant 0 : index
    %c0_37 = arith.constant 0 : index
    %132 = vector.load %arg8[%c0_36, %c0_37] : memref<1x32xf32, #tpu.memory_space<vmem>>, vector<1x32xf32>
    %c0_38 = arith.constant 0 : index
    %c0_39 = arith.constant 0 : index
    %133 = vector.load %arg9[%c0_38, %c0_39] : memref<1x32xf32, #tpu.memory_space<vmem>>, vector<1x32xf32>
    %cst_40 = arith.constant dense<0.000000e+00> : vector<8xf32>
    %134 = vector.multi_reduction <add>, %131, %cst_40 [1] : vector<8x32xf32> to vector<8xf32>
    %135 = vector.shape_cast %134 : vector<8xf32> to vector<8x1xf32>
    %cst_41 = arith.constant 3.200000e+01 : f32
    %136 = vector.broadcast %cst_41 : f32 to vector<8x1xf32>
    %137 = arith.divf %135, %136 : vector<8x1xf32>
    %138 = vector.broadcast %137 : vector<8x1xf32> to vector<8x32xf32>
    %139 = arith.subf %131, %138 : vector<8x32xf32>
    %140 = arith.mulf %139, %139 : vector<8x32xf32>
    %cst_42 = arith.constant dense<0.000000e+00> : vector<8xf32>
    %141 = vector.multi_reduction <add>, %140, %cst_42 [1] : vector<8x32xf32> to vector<8xf32>
    %142 = vector.shape_cast %141 : vector<8xf32> to vector<8x1xf32>
    %cst_43 = arith.constant 3.200000e+01 : f32
    %143 = vector.broadcast %cst_43 : f32 to vector<8x1xf32>
    %144 = arith.divf %142, %143 : vector<8x1xf32>
    %145 = vector.broadcast %137 : vector<8x1xf32> to vector<8x32xf32>
    %146 = arith.subf %131, %145 : vector<8x32xf32>
    %cst_44 = arith.constant 9.99999974E-6 : f32
    %147 = vector.broadcast %cst_44 : f32 to vector<8x1xf32>
    %148 = arith.addf %144, %147 : vector<8x1xf32>
    %149 = math.rsqrt %148 : vector<8x1xf32>
    %150 = vector.broadcast %149 : vector<8x1xf32> to vector<8x32xf32>
    %151 = arith.mulf %146, %150 : vector<8x32xf32>
    %152 = vector.broadcast %132 : vector<1x32xf32> to vector<8x32xf32>
    %153 = arith.mulf %151, %152 : vector<8x32xf32>
    %154 = vector.broadcast %133 : vector<1x32xf32> to vector<8x32xf32>
    %155 = arith.addf %153, %154 : vector<8x32xf32>
    %156 = arith.truncf %155 : vector<8x32xf32> to vector<8x32xbf16>
    %c0_45 = arith.constant 0 : index
    %c0_46 = arith.constant 0 : index
    %157 = vector.load %arg10[%c0_45, %c0_46] : memref<32x128xbf16, #tpu.memory_space<vmem>>, vector<32x128xbf16>
    %cst_47 = arith.constant dense<0.000000e+00> : vector<8x128xf32>
    %158 = tpu.matmul %156, %157, %cst_47 {dimension_numbers = #tpu.dot_dimension_numbers<[1], [0], [0], [1], [0, 0, 1, 1], [], []>} : vector<8x32xbf16>, vector<32x128xbf16>, vector<8x128xf32> -> vector<8x128xf32>
    %c0_48 = arith.constant 0 : index
    %c0_49 = arith.constant 0 : index
    %159 = vector.load %arg11[%c0_48, %c0_49] : memref<1x128xf32, #tpu.memory_space<vmem>>, vector<1x128xf32>
    %160 = vector.broadcast %159 : vector<1x128xf32> to vector<8x128xf32>
    %161 = arith.addf %158, %160 : vector<8x128xf32>
    %cst_50 = arith.constant 1.702000e+00 : f32
    %162 = vector.broadcast %cst_50 : f32 to vector<8x128xf32>
    %163 = arith.mulf %162, %161 : vector<8x128xf32>
    %164 = arith.negf %163 : vector<8x128xf32>
    %165 = math.exp %164 : vector<8x128xf32>
    %cst_51 = arith.constant 1.000000e+00 : f32
    %166 = vector.broadcast %cst_51 : f32 to vector<8x128xf32>
    %167 = arith.addf %166, %165 : vector<8x128xf32>
    %168 = arith.divf %166, %167 : vector<8x128xf32>
    %169 = arith.mulf %161, %168 : vector<8x128xf32>
    %170 = arith.truncf %169 : vector<8x128xf32> to vector<8x128xbf16>
    %c0_52 = arith.constant 0 : index
    %c0_53 = arith.constant 0 : index
    %171 = vector.load %arg12[%c0_52, %c0_53] : memref<128x32xbf16, #tpu.memory_space<vmem>>, vector<128x32xbf16>
    %cst_54 = arith.constant dense<0.000000e+00> : vector<8x32xf32>
    %172 = tpu.matmul %170, %171, %cst_54 {dimension_numbers = #tpu.dot_dimension_numbers<[1], [0], [0], [1], [0, 0, 1, 1], [], []>} : vector<8x128xbf16>, vector<128x32xbf16>, vector<8x32xf32> -> vector<8x32xf32>
    %c0_55 = arith.constant 0 : index
    %c0_56 = arith.constant 0 : index
    %173 = vector.load %arg13[%c0_55, %c0_56] : memref<1x32xf32, #tpu.memory_space<vmem>>, vector<1x32xf32>
    %174 = vector.broadcast %173 : vector<1x32xf32> to vector<8x32xf32>
    %175 = arith.addf %172, %174 : vector<8x32xf32>
    %176 = arith.addf %131, %175 : vector<8x32xf32>
    %177 = vector.shape_cast %176 : vector<8x32xf32> to vector<1x8x32xf32>
    %c0_57 = arith.constant 0 : index
    %c0_58 = arith.constant 0 : index
    %c0_59 = arith.constant 0 : index
    %178 = vector.load %arg14[%c0_57, %c0_58, %c0_59] : memref<1x8x32xf32, #tpu.memory_space<vmem>>, vector<1x8x32xf32>
    tpu.vector_store %arg14[%c0_57, %c0_58, %c0_59], %177 {strides = array<i32>} : memref<1x8x32xf32, #tpu.memory_space<vmem>>, vector<1x8x32xf32>,
    return
  }
  func.func @transform_0(%arg0: i32) -> (i32, i32, i32) {
    %c0_i32 = arith.constant 0 : i32
    %c0_i32_0 = arith.constant 0 : i32
    %c0_i32_1 = arith.constant 0 : i32
    return %arg0, %c0_i32, %c0_i32_0 : i32, i32, i32
  }
  func.func @transform_1(%arg0: i32) -> (i32, i32) {
    %c0_i32 = arith.constant 0 : i32
    %c0_i32_0 = arith.constant 0 : i32
    %c0_i32_1 = arith.constant 0 : i32
    return %c0_i32, %c0_i32_0 : i32, i32
  }
  func.func @transform_2(%arg0: i32) -> (i32, i32) {
    %c0_i32 = arith.constant 0 : i32
    %c0_i32_0 = arith.constant 0 : i32
    %c0_i32_1 = arith.constant 0 : i32
    return %c0_i32, %c0_i32_0 : i32, i32
  }
  func.func @transform_3(%arg0: i32) -> (i32, i32) {
    %c0_i32 = arith.constant 0 : i32
    %c0_i32_0 = arith.constant 0 : i32
    %c0_i32_1 = arith.constant 0 : i32
    return %c0_i32, %c0_i32_0 : i32, i32
  }
  func.func @transform_4(%arg0: i32) -> (i32, i32) {
    %c0_i32 = arith.constant 0 : i32
    %c0_i32_0 = arith.constant 0 : i32
    %c0_i32_1 = arith.constant 0 : i32
    return %c0_i32, %c0_i32_0 : i32, i32
  }
  func.func @transform_5(%arg0: i32) -> (i32, i32) {
    %c0_i32 = arith.constant 0 : i32
    %c0_i32_0 = arith.constant 0 : i32
    %c0_i32_1 = arith.constant 0 : i32
    return %c0_i32, %c0_i32_0 : i32, i32
  }
  func.func @transform_6(%arg0: i32) -> (i32, i32) {
    %c0_i32 = arith.constant 0 : i32
    %c0_i32_0 = arith.constant 0 : i32
    %c0_i32_1 = arith.constant 0 : i32
    return %c0_i32, %c0_i32_0 : i32, i32
  }
  func.func @transform_7(%arg0: i32) -> (i32, i32) {
    %c0_i32 = arith.constant 0 : i32
    %c0_i32_0 = arith.constant 0 : i32
    %c0_i32_1 = arith.constant 0 : i32
    return %c0_i32, %c0_i32_0 : i32, i32
  }
  func.func @transform_8(%arg0: i32) -> (i32, i32) {
    %c0_i32 = arith.constant 0 : i32
    %c0_i32_0 = arith.constant 0 : i32
    %c0_i32_1 = arith.constant 0 : i32
    return %c0_i32, %c0_i32_0 : i32, i32
  }
  func.func @transform_9(%arg0: i32) -> (i32, i32) {
    %c0_i32 = arith.constant 0 : i32
    %c0_i32_0 = arith.constant 0 : i32
    %c0_i32_1 = arith.constant 0 : i32
    return %c0_i32, %c0_i32_0 : i32, i32
  }
  func.func @transform_10(%arg0: i32) -> (i32, i32) {
    %c0_i32 = arith.constant 0 : i32
    %c0_i32_0 = arith.constant 0 : i32
    %c0_i32_1 = arith.constant 0 : i32
    return %c0_i32, %c0_i32_0 : i32, i32
  }
  func.func @transform_11(%arg0: i32) -> (i32, i32) {
    %c0_i32 = arith.constant 0 : i32
    %c0_i32_0 = arith.constant 0 : i32
    %c0_i32_1 = arith.constant 0 : i32
    return %c0_i32, %c0_i32_0 : i32, i32
  }
  func.func @transform_12(%arg0: i32) -> (i32, i32) {
    %c0_i32 = arith.constant 0 : i32
    %c0_i32_0 = arith.constant 0 : i32
    %c0_i32_1 = arith.constant 0 : i32
    return %c0_i32, %c0_i32_0 : i32, i32
  }
  func.func @transform_13(%arg0: i32) -> (i32, i32, i32) {
    %c0_i32 = arith.constant 0 : i32
    %c0_i32_0 = arith.constant 0 : i32
    %c0_i32_1 = arith.constant 0 : i32
    return %arg0, %c0_i32, %c0_i32_0 : i32, i32, i32
  }
}

</mosaic_0001>

<llo_original>
// kernel: tpu_custom_call.1
$region0: #{tpu_custom_call.1}
  #allocation0 [shape = 'u32[]', space=smem, size = 0x4, offset = 0x4, fixed_abs, tag = 'smem constant byte address 0x4 - core index']
  #allocation1 [shape = 'u32[144,128]{1,0:T(1,128)}', space=vmem, size = 0x12000, scoped, tag = 'internal scratch']
  %s0 = inlined_call_operand.vmem [shape: f32[4,8,32], index: 0, kind: input, shape index: {}]
  %s1 = inlined_call_operand.vmem [shape: f32[1,32], index: 1, kind: input, shape index: {}]
  %s2 = inlined_call_operand.vmem [shape: f32[1,32], index: 2, kind: input, shape index: {}]
  %s3 = inlined_call_operand.vmem [shape: bf16[32,96], index: 3, kind: input, shape index: {}]
  %s4 = inlined_call_operand.vmem [shape: f32[1,96], index: 4, kind: input, shape index: {}]
  %s5 = inlined_call_operand.vmem [shape: bf16[32,32], index: 5, kind: input, shape index: {}]
  %s6 = inlined_call_operand.vmem [shape: f32[1,32], index: 6, kind: input, shape index: {}]
  %s7 = inlined_call_operand.vmem [shape: f32[1,32], index: 7, kind: input, shape index: {}]
  %s8 = inlined_call_operand.vmem [shape: f32[1,32], index: 8, kind: input, shape index: {}]
  %s9 = inlined_call_operand.vmem [shape: bf16[32,128], index: 9, kind: input, shape index: {}]
  %s10 = inlined_call_operand.vmem [shape: f32[1,128], index: 10, kind: input, shape index: {}]
  %s11 = inlined_call_operand.vmem [shape: bf16[128,32], index: 11, kind: input, shape index: {}]
  %s12 = inlined_call_operand.vmem [shape: f32[1,32], index: 12, kind: input, shape index: {}]
  %s13 = inlined_call_operand.hbm [shape: f32[4,8,32], index: 13, kind: output, shape index: {}]
  %s14 = sld [smem:[#allocation0]]
  $region85: #{tpu_custom_call.1} parent=0
    _
  %s16 = ssub.s32 1, %s14
  %s17 = scalar_select 0, %s16, %s14
  $region1: #{tpu_custom_call.1} parent=0
    #allocation2 [shape = 'u8[8192]{0}', space=vmem, size = 0x2000, scoped, tag = 'output window, operand 0']
    #allocation3 [shape = 's32[2]{0}', space=sflag, size = 0x8, scoped, tag = 'scoped memory for tpu_custom_call.1']
    %18 = vsyncpa [#allocation3], 0
    %s19 = scalar_lea.sflag [#allocation3], 1
    %20 = vsyncpa %s19, 0
    loop: start=0, step=1, limit=6
    $region2: #{tpu_custom_call.1} parent=1 // loop_pre_header
      _
    $region3: #{tpu_custom_call.1} parent=1 // loop_header
      %s22 = sphi 0, %s26
      %p23 = scmp.ge.s32.totalorder %s22, 6
      %s32 = sphi 0, %s34
      %s35 = sphi 0, %s32
      %s36 = sphi 0, %s35
      %s52 = sphi 0, %s36
      %s56 = sphi 0, %s56
      %s58 = sphi 0, %s56
      %s59 = sphi 0, %s58
      %s73 = sphi 0, %s59
      %s77 = sphi 0, %s77
      %s79 = sphi 0, %s77
      %s80 = sphi 0, %s79
      %s94 = sphi 0, %s80
      %s98 = sphi 0, %s98
      %s100 = sphi 0, %s98
      %s101 = sphi 0, %s100
      %s115 = sphi 0, %s101
      %s119 = sphi 0, %s119
      %s121 = sphi 0, %s119
      %s122 = sphi 0, %s121
      %s136 = sphi 0, %s122
      %s140 = sphi 0, %s140
      %s142 = sphi 0, %s140
      %s143 = sphi 0, %s142
      %s157 = sphi 0, %s143
      %s161 = sphi 0, %s161
      %s163 = sphi 0, %s161
      %s164 = sphi 0, %s163
      %s178 = sphi 0, %s164
      %s182 = sphi 0, %s182
      %s184 = sphi 0, %s182
      %s185 = sphi 0, %s184
      %s199 = sphi 0, %s185
      %s203 = sphi 0, %s203
      %s205 = sphi 0, %s203
      %s206 = sphi 0, %s205
      %s220 = sphi 0, %s206
      %s224 = sphi 0, %s224
      %s226 = sphi 0, %s224
      %s227 = sphi 0, %s226
      %s241 = sphi 0, %s227
      %s245 = sphi 0, %s245
      %s247 = sphi 0, %s245
      %s248 = sphi 0, %s247
      %s262 = sphi 0, %s248
      %s266 = sphi 0, %s266
      %s268 = sphi 0, %s266
      %s269 = sphi 0, %s268
      %s283 = sphi 0, %s269
      %s287 = sphi 0, %s287
      %s289 = sphi 0, %s287
      %s290 = sphi 0, %s289
      %s304 = sphi 0, %s290
      %s310 = sphi 0, %s312
      %s313 = sphi 0, %s310
      %s314 = sphi 0, %s313
      %s330 = sphi 0, %s314
    $region4: #{tpu_custom_call.1} parent=1 // loop_header_branch
      %25 = sbr.rel (%p23) target = $region8
    $region5: #{tpu_custom_call.1} parent=1 // loop_body
      %s27 = ssub.s32 %s22, 1
      %s28 = ssub.s32 %s22, 2
      %s29 = sadd.s32 %s22, 1
      %s30 = ssub.s32 %s22, %s29
      %p31 = scmp.eq.s32.totalorder %s30, 0
      %s33 = sadd.s32 %s32, 1
      %s34 = scalar_select %p31, %s32, %s33
      %p37 = pneg %p31
      %p38 = scmp.eq.s32.totalorder %s22, 3
      %p39 = por %p37, %p38
      %p40 = scmp.ne.s32.totalorder %s32, %s35
      %p41 = scmp.eq.s32.totalorder %s22, 0
      %p42 = por %p40, %p41
      %p43 = scmp.ne.s32.totalorder %s32, %s35
      %p44 = scmp.eq.s32.totalorder %s27, 3
      %p45 = por %p43, %p44
      %p46 = scmp.ne.s32.totalorder %s35, %s36
      %p47 = scmp.eq.s32.totalorder %s27, 0
      %p48 = por %p46, %p47
      %p49 = scmp.ne.s32.totalorder %s35, %s36
      %p50 = scmp.eq.s32.totalorder %s28, 3
      %p51 = por %p49, %p50
      %p53 = scmp.ne.s32.totalorder %s36, %s52
      %p54 = scmp.eq.s32.totalorder %s28, 0
      %p55 = por %p53, %p54
      %s57 = sadd.s32 %s56, 1
      %p60 = scmp.eq.s32.totalorder %s22, 3
      %p61 = scmp.ne.s32.totalorder %s56, %s58
      %p62 = scmp.eq.s32.totalorder %s22, 0
      %p63 = por %p61, %p62
      %p64 = scmp.ne.s32.totalorder %s56, %s58
      %p65 = scmp.eq.s32.totalorder %s27, 3
      %p66 = por %p64, %p65
      %p67 = scmp.ne.s32.totalorder %s58, %s59
      %p68 = scmp.eq.s32.totalorder %s27, 0
      %p69 = por %p67, %p68
      %p70 = scmp.ne.s32.totalorder %s58, %s59
      %p71 = scmp.eq.s32.totalorder %s28, 3
      %p72 = por %p70, %p71
      %p74 = scmp.ne.s32.totalorder %s59, %s73
      %p75 = scmp.eq.s32.totalorder %s28, 0
      %p76 = por %p74, %p75
      %s78 = sadd.s32 %s77, 1
      %p81 = scmp.eq.s32.totalorder %s22, 3
      %p82 = scmp.ne.s32.totalorder %s77, %s79
      %p83 = scmp.eq.s32.totalorder %s22, 0
      %p84 = por %p82, %p83
      %p85 = scmp.ne.s32.totalorder %s77, %s79
      %p86 = scmp.eq.s32.totalorder %s27, 3
      %p87 = por %p85, %p86
      %p88 = scmp.ne.s32.totalorder %s79, %s80
      %p89 = scmp.eq.s32.totalorder %s27, 0
      %p90 = por %p88, %p89
      %p91 = scmp.ne.s32.totalorder %s79, %s80
      %p92 = scmp.eq.s32.totalorder %s28, 3
      %p93 = por %p91, %p92
      %p95 = scmp.ne.s32.totalorder %s80, %s94
      %p96 = scmp.eq.s32.totalorder %s28, 0
      %p97 = por %p95, %p96
      %s99 = sadd.s32 %s98, 1
      %p102 = scmp.eq.s32.totalorder %s22, 3
      %p103 = scmp.ne.s32.totalorder %s98, %s100
      %p104 = scmp.eq.s32.totalorder %s22, 0
      %p105 = por %p103, %p104
      %p106 = scmp.ne.s32.totalorder %s98, %s100
      %p107 = scmp.eq.s32.totalorder %s27, 3
      %p108 = por %p106, %p107
      %p109 = scmp.ne.s32.totalorder %s100, %s101
      %p110 = scmp.eq.s32.totalorder %s27, 0
      %p111 = por %p109, %p110
      %p112 = scmp.ne.s32.totalorder %s100, %s101
      %p113 = scmp.eq.s32.totalorder %s28, 3
      %p114 = por %p112, %p113
      %p116 = scmp.ne.s32.totalorder %s101, %s115
      %p117 = scmp.eq.s32.totalorder %s28, 0
      %p118 = por %p116, %p117
      %s120 = sadd.s32 %s119, 1
      %p123 = scmp.eq.s32.totalorder %s22, 3
      %p124 = scmp.ne.s32.totalorder %s119, %s121
      %p125 = scmp.eq.s32.totalorder %s22, 0
      %p126 = por %p124, %p125
      %p127 = scmp.ne.s32.totalorder %s119, %s121
      %p128 = scmp.eq.s32.totalorder %s27, 3
      %p129 = por %p127, %p128
      %p130 = scmp.ne.s32.totalorder %s121, %s122
      %p131 = scmp.eq.s32.totalorder %s27, 0
      %p132 = por %p130, %p131
      %p133 = scmp.ne.s32.totalorder %s121, %s122
      %p134 = scmp.eq.s32.totalorder %s28, 3
      %p135 = por %p133, %p134
      %p137 = scmp.ne.s32.totalorder %s122, %s136
      %p138 = scmp.eq.s32.totalorder %s28, 0
      %p139 = por %p137, %p138
      %s141 = sadd.s32 %s140, 1
      %p144 = scmp.eq.s32.totalorder %s22, 3
      %p145 = scmp.ne.s32.totalorder %s140, %s142
      %p146 = scmp.eq.s32.totalorder %s22, 0
      %p147 = por %p145, %p146
      %p148 = scmp.ne.s32.totalorder %s140, %s142
      %p149 = scmp.eq.s32.totalorder %s27, 3
      %p150 = por %p148, %p149
      %p151 = scmp.ne.s32.totalorder %s142, %s143
      %p152 = scmp.eq.s32.totalorder %s27, 0
      %p153 = por %p151, %p152
      %p154 = scmp.ne.s32.totalorder %s142, %s143
      %p155 = scmp.eq.s32.totalorder %s28, 3
      %p156 = por %p154, %p155
      %p158 = scmp.ne.s32.totalorder %s143, %s157
      %p159 = scmp.eq.s32.totalorder %s28, 0
      %p160 = por %p158, %p159
      %s162 = sadd.s32 %s161, 1
      %p165 = scmp.eq.s32.totalorder %s22, 3
      %p166 = scmp.ne.s32.totalorder %s161, %s163
      %p167 = scmp.eq.s32.totalorder %s22, 0
      %p168 = por %p166, %p167
      %p169 = scmp.ne.s32.totalorder %s161, %s163
      %p170 = scmp.eq.s32.totalorder %s27, 3
      %p171 = por %p169, %p170
      %p172 = scmp.ne.s32.totalorder %s163, %s164
      %p173 = scmp.eq.s32.totalorder %s27, 0
      %p174 = por %p172, %p173
      %p175 = scmp.ne.s32.totalorder %s163, %s164
      %p176 = scmp.eq.s32.totalorder %s28, 3
      %p177 = por %p175, %p176
      %p179 = scmp.ne.s32.totalorder %s164, %s178
      %p180 = scmp.eq.s32.totalorder %s28, 0
      %p181 = por %p179, %p180
      %s183 = sadd.s32 %s182, 1
      %p186 = scmp.eq.s32.totalorder %s22, 3
      %p187 = scmp.ne.s32.totalorder %s182, %s184
      %p188 = scmp.eq.s32.totalorder %s22, 0
      %p189 = por %p187, %p188
      %p190 = scmp.ne.s32.totalorder %s182, %s184
      %p191 = scmp.eq.s32.totalorder %s27, 3
      %p192 = por %p190, %p191
      %p193 = scmp.ne.s32.totalorder %s184, %s185
      %p194 = scmp.eq.s32.totalorder %s27, 0
      %p195 = por %p193, %p194
      %p196 = scmp.ne.s32.totalorder %s184, %s185
      %p197 = scmp.eq.s32.totalorder %s28, 3
      %p198 = por %p196, %p197
      %p200 = scmp.ne.s32.totalorder %s185, %s199
      %p201 = scmp.eq.s32.totalorder %s28, 0
      %p202 = por %p200, %p201
      %s204 = sadd.s32 %s203, 1
      %p207 = scmp.eq.s32.totalorder %s22, 3
      %p208 = scmp.ne.s32.totalorder %s203, %s205
      %p209 = scmp.eq.s32.totalorder %s22, 0
      %p210 = por %p208, %p209
      %p211 = scmp.ne.s32.totalorder %s203, %s205
      %p212 = scmp.eq.s32.totalorder %s27, 3
      %p213 = por %p211, %p212
      %p214 = scmp.ne.s32.totalorder %s205, %s206
      %p215 = scmp.eq.s32.totalorder %s27, 0
      %p216 = por %p214, %p215
      %p217 = scmp.ne.s32.totalorder %s205, %s206
      %p218 = scmp.eq.s32.totalorder %s28, 3
      %p219 = por %p217, %p218
      %p221 = scmp.ne.s32.totalorder %s206, %s220
      %p222 = scmp.eq.s32.totalorder %s28, 0
      %p223 = por %p221, %p222
      %s225 = sadd.s32 %s224, 1
      %p228 = scmp.eq.s32.totalorder %s22, 3
      %p229 = scmp.ne.s32.totalorder %s224, %s226
      %p230 = scmp.eq.s32.totalorder %s22, 0
      %p231 = por %p229, %p230
      %p232 = scmp.ne.s32.totalorder %s224, %s226
      %p233 = scmp.eq.s32.totalorder %s27, 3
      %p234 = por %p232, %p233
      %p235 = scmp.ne.s32.totalorder %s226, %s227
      %p236 = scmp.eq.s32.totalorder %s27, 0
      %p237 = por %p235, %p236
      %p238 = scmp.ne.s32.totalorder %s226, %s227
      %p239 = scmp.eq.s32.totalorder %s28, 3
      %p240 = por %p238, %p239
      %p242 = scmp.ne.s32.totalorder %s227, %s241
      %p243 = scmp.eq.s32.totalorder %s28, 0
      %p244 = por %p242, %p243
      %s246 = sadd.s32 %s245, 1
      %p249 = scmp.eq.s32.totalorder %s22, 3
      %p250 = scmp.ne.s32.totalorder %s245, %s247
      %p251 = scmp.eq.s32.totalorder %s22, 0
      %p252 = por %p250, %p251
      %p253 = scmp.ne.s32.totalorder %s245, %s247
      %p254 = scmp.eq.s32.totalorder %s27, 3
      %p255 = por %p253, %p254
      %p256 = scmp.ne.s32.totalorder %s247, %s248
      %p257 = scmp.eq.s32.totalorder %s27, 0
      %p258 = por %p256, %p257
      %p259 = scmp.ne.s32.totalorder %s247, %s248
      %p260 = scmp.eq.s32.totalorder %s28, 3
      %p261 = por %p259, %p260
      %p263 = scmp.ne.s32.totalorder %s248, %s262
      %p264 = scmp.eq.s32.totalorder %s28, 0
      %p265 = por %p263, %p264
      %s267 = sadd.s32 %s266, 1
      %p270 = scmp.eq.s32.totalorder %s22, 3
      %p271 = scmp.ne.s32.totalorder %s266, %s268
      %p272 = scmp.eq.s32.totalorder %s22, 0
      %p273 = por %p271, %p272
      %p274 = scmp.ne.s32.totalorder %s266, %s268
      %p275 = scmp.eq.s32.totalorder %s27, 3
      %p276 = por %p274, %p275
      %p277 = scmp.ne.s32.totalorder %s268, %s269
      %p278 = scmp.eq.s32.totalorder %s27, 0
      %p279 = por %p277, %p278
      %p280 = scmp.ne.s32.totalorder %s268, %s269
      %p281 = scmp.eq.s32.totalorder %s28, 3
      %p282 = por %p280, %p281
      %p284 = scmp.ne.s32.totalorder %s269, %s283
      %p285 = scmp.eq.s32.totalorder %s28, 0
      %p286 = por %p284, %p285
      %s288 = sadd.s32 %s287, 1
      %p291 = scmp.eq.s32.totalorder %s22, 3
      %p292 = scmp.ne.s32.totalorder %s287, %s289
      %p293 = scmp.eq.s32.totalorder %s22, 0
      %p294 = por %p292, %p293
      %p295 = scmp.ne.s32.totalorder %s287, %s289
      %p296 = scmp.eq.s32.totalorder %s27, 3
      %p297 = por %p295, %p296
      %p298 = scmp.ne.s32.totalorder %s289, %s290
      %p299 = scmp.eq.s32.totalorder %s27, 0
      %p300 = por %p298, %p299
      %p301 = scmp.ne.s32.totalorder %s289, %s290
      %p302 = scmp.eq.s32.totalorder %s28, 3
      %p303 = por %p301, %p302
      %p305 = scmp.ne.s32.totalorder %s290, %s304
      %p306 = scmp.eq.s32.totalorder %s28, 0
      %p307 = por %p305, %p306
      %s308 = ssub.s32 %s22, %s29
      %p309 = scmp.eq.s32.totalorder %s308, 0
      %s311 = sadd.s32 %s310, 1
      %s312 = scalar_select %p309, %s310, %s311
      %p315 = pneg %p309
      %p316 = scmp.eq.s32.totalorder %s22, 3
      %p317 = por %p315, %p316
      %p318 = scmp.ne.s32.totalorder %s310, %s313
      %p319 = scmp.eq.s32.totalorder %s22, 0
      %p320 = por %p318, %p319
      %p321 = scmp.ne.s32.totalorder %s310, %s313
      %p322 = scmp.eq.s32.totalorder %s27, 3
      %p323 = por %p321, %p322
      %p324 = scmp.ne.s32.totalorder %s313, %s314
      %p325 = scmp.eq.s32.totalorder %s27, 0
      %p326 = por %p324, %p325
      %p327 = scmp.ne.s32.totalorder %s313, %s314
      %p328 = scmp.eq.s32.totalorder %s28, 3
      %p329 = por %p327, %p328
      %p331 = scmp.ne.s32.totalorder %s314, %s330
      %p332 = scmp.eq.s32.totalorder %s28, 0
      %p333 = por %p331, %p332
      %p334 = scmp.le.s32.totalorder 1, %s22
      %p335 = scmp.lt.s32.totalorder %s22, 5
      %p336 = pnand %p334, %p335
      %p337 = pneg %p336
      // Predicated region
      $region9: #{tpu_custom_call.1} parent=5 // pred_check
        _
      $region10: #{tpu_custom_call.1} parent=5 // pred_check_branch
        %339 = sbr.rel (%p336) target = $region12
      $region11: #{tpu_custom_call.1} parent=5 // pred_region
        %s340 = ssub.s32 %s22, 1
        // Predicated region
        $region13: #{tpu_custom_call.1} parent=11 // pred_check
          %p341 = pneg %p69
        $region14: #{tpu_custom_call.1} parent=11 // pred_check_branch
          %343 = sbr.rel (%p341) target = $region16
        $region15: #{tpu_custom_call.1} parent=11 // pred_region
          _
        $region16: #{tpu_custom_call.1} parent=11 // pred_fallthru
          _
        // Predicated region
        $region17: #{tpu_custom_call.1} parent=11 // pred_check
          %p344 = pneg %p90
        $region18: #{tpu_custom_call.1} parent=11 // pred_check_branch
          %346 = sbr.rel (%p344) target = $region20
        $region19: #{tpu_custom_call.1} parent=11 // pred_region
          _
        $region20: #{tpu_custom_call.1} parent=11 // pred_fallthru
          _
        // Predicated region
        $region21: #{tpu_custom_call.1} parent=11 // pred_check
          %p347 = pneg %p111
        $region22: #{tpu_custom_call.1} parent=11 // pred_check_branch
          %349 = sbr.rel (%p347) target = $region24
        $region23: #{tpu_custom_call.1} parent=11 // pred_region
          _
        $region24: #{tpu_custom_call.1} parent=11 // pred_fallthru
          _
        // Predicated region
        $region25: #{tpu_custom_call.1} parent=11 // pred_check
          %p350 = pneg %p132
        $region26: #{tpu_custom_call.1} parent=11 // pred_check_branch
          %352 = sbr.rel (%p350) target = $region28
        $region27: #{tpu_custom_call.1} parent=11 // pred_region
          _
        $region28: #{tpu_custom_call.1} parent=11 // pred_fallthru
          _
        // Predicated region
        $region29: #{tpu_custom_call.1} parent=11 // pred_check
          %p353 = pneg %p153
        $region30: #{tpu_custom_call.1} parent=11 // pred_check_branch
          %355 = sbr.rel (%p353) target = $region32
        $region31: #{tpu_custom_call.1} parent=11 // pred_region
          _
        $region32: #{tpu_custom_call.1} parent=11 // pred_fallthru
          _
        // Predicated region
        $region33: #{tpu_custom_call.1} parent=11 // pred_check
          %p356 = pneg %p174
        $region34: #{tpu_custom_call.1} parent=11 // pred_check_branch
          %358 = sbr.rel (%p356) target = $region36
        $region35: #{tpu_custom_call.1} parent=11 // pred_region
          _
        $region36: #{tpu_custom_call.1} parent=11 // pred_fallthru
          _
        // Predicated region
        $region37: #{tpu_custom_call.1} parent=11 // pred_check
          %p359 = pneg %p195
        $region38: #{tpu_custom_call.1} parent=11 // pred_check_branch
          %361 = sbr.rel (%p359) target = $region40
        $region39: #{tpu_custom_call.1} parent=11 // pred_region
          _
        $region40: #{tpu_custom_call.1} parent=11 // pred_fallthru
          _
        // Predicated region
        $region41: #{tpu_custom_call.1} parent=11 // pred_check
          %p362 = pneg %p216
        $region42: #{tpu_custom_call.1} parent=11 // pred_check_branch
          %364 = sbr.rel (%p362) target = $region44
        $region43: #{tpu_custom_call.1} parent=11 // pred_region
          _
        $region44: #{tpu_custom_call.1} parent=11 // pred_fallthru
          _
        // Predicated region
        $region45: #{tpu_custom_call.1} parent=11 // pred_check
          %p365 = pneg %p237
        $region46: #{tpu_custom_call.1} parent=11 // pred_check_branch
          %367 = sbr.rel (%p365) target = $region48
        $region47: #{tpu_custom_call.1} parent=11 // pred_region
          _
        $region48: #{tpu_custom_call.1} parent=11 // pred_fallthru
          _
        // Predicated region
        $region49: #{tpu_custom_call.1} parent=11 // pred_check
          %p368 = pneg %p258
        $region50: #{tpu_custom_call.1} parent=11 // pred_check_branch
          %370 = sbr.rel (%p368) target = $region52
        $region51: #{tpu_custom_call.1} parent=11 // pred_region
          _
        $region52: #{tpu_custom_call.1} parent=11 // pred_fallthru
          _
        // Predicated region
        $region53: #{tpu_custom_call.1} parent=11 // pred_check
          %p371 = pneg %p279
        $region54: #{tpu_custom_call.1} parent=11 // pred_check_branch
          %373 = sbr.rel (%p371) target = $region56
        $region55: #{tpu_custom_call.1} parent=11 // pred_region
          _
        $region56: #{tpu_custom_call.1} parent=11 // pred_fallthru
          _
        // Predicated region
        $region57: #{tpu_custom_call.1} parent=11 // pred_check
          %p374 = pneg %p300
        $region58: #{tpu_custom_call.1} parent=11 // pred_check_branch
          %376 = sbr.rel (%p374) target = $region60
        $region59: #{tpu_custom_call.1} parent=11 // pred_region
          _
        $region60: #{tpu_custom_call.1} parent=11 // pred_fallthru
          _
      $region12: #{tpu_custom_call.1} parent=5 // pred_fallthru
        _
      %p377 = scmp.lt.s32.totalorder %s22, 4
      // Predicated region
      $region61: #{tpu_custom_call.1} parent=5 // pred_check
        %p378 = pneg %p377
      $region62: #{tpu_custom_call.1} parent=5 // pred_check_branch
        %380 = sbr.rel (%p378) target = $region64
      $region63: #{tpu_custom_call.1} parent=5 // pred_region
        // Predicated region
        $region65: #{tpu_custom_call.1} parent=63 // pred_check
          %p381 = pneg %p42
        $region66: #{tpu_custom_call.1} parent=63 // pred_check_branch
          %383 = sbr.rel (%p381) target = $region68
        $region67: #{tpu_custom_call.1} parent=63 // pred_region
          %p384 = scmp.lt.s32.totalorder %s22, 3
          %s385 = scalar_select %p384, %s22, 3
          %s386 = smul.addr %s385, 8
          %s387 = scalar_lea.vmem %s0, %s386
        $region68: #{tpu_custom_call.1} parent=63 // pred_fallthru
          _
      $region64: #{tpu_custom_call.1} parent=5 // pred_fallthru
        _
      %p388 = scmp.le.s32.totalorder 1, %s22
      %p389 = scmp.lt.s32.totalorder %s22, 5
      %p390 = pnand %p388, %p389
      %p391 = pneg %p390
      // Predicated region
      $region69: #{tpu_custom_call.1} parent=5 // pred_check
        _
      $region70: #{tpu_custom_call.1} parent=5 // pred_check_branch
        %393 = sbr.rel (%p390) target = $region72
      $region71: #{tpu_custom_call.1} parent=5 // pred_region
        %s394 = ssub.s32 %s22, 1
        %p395 = scmp.lt.s32.totalorder %s27, 3
        %s396 = scalar_select %p395, %s27, 3
        %s397 = smul.addr %s396, 8
        %s398 = scalar_lea.vmem %s0, %s397
        %p399 = pneg %p48
        %p400 = pneg %p45
        %p401 = pneg %p69
        %p402 = pneg %p66
        %p403 = pneg %p90
        %p404 = pneg %p87
        %p405 = pneg %p111
        %p406 = pneg %p108
        %p407 = pneg %p132
        %p408 = pneg %p129
        %p409 = pneg %p153
        %p410 = pneg %p150
        %p411 = pneg %p174
        %p412 = pneg %p171
        %p413 = pneg %p195
        %p414 = pneg %p192
        %p415 = pneg %p216
        %p416 = pneg %p213
        %p417 = pneg %p237
        %p418 = pneg %p234
        %p419 = pneg %p258
        %p420 = pneg %p255
        %p421 = pneg %p279
        %p422 = pneg %p276
        %p423 = pneg %p300
        %p424 = pneg %p297
        %p425 = pneg %p326
        %p426 = pneg %p323
        %s427 = sand.u32 %s313, 1
        %s428 = scalar_lea.sflag [#allocation3], %s427
        %s429 = sand.u32 %s313, 1
        %s430 = smul.addr %s429, 8
        %s431 = scalar_lea.vmem [#allocation2], %s430
        %p432 = scmp.lt.s32.totalorder %s27, 3
        %s433 = scalar_select %p432, %s27, 3
        %s434 = smul.addr %s433, 8
        %s435 = scalar_lea.vmem %s0, %s434
        %v437 = vld [vmem:[%s435] sm:$0xff]
        %v438 = vld [vmem:[%s1] sm:$0x1]
        %v439 = vld [vmem:[%s2] sm:$0x1]
        %vm440 = vcmask 261120
        %v441 = vsel %vm440, %v437, 0.0
        %442 = vadd.xlane.f32.xlu0 %v441
        %v443 = vpop.xlane.xlu0 %442
        %v444 = vrcp.pop 32.0
        %v445 = vmul.f32 %v443, %v444
        %v446 = vsub.f32 %v437, %v445
        %v447 = vmul.f32 %v446, %v446
        %v448 = vsel %vm440, %v447, 0.0
        %449 = vadd.xlane.f32.xlu0 %v448
        %v450 = vpop.xlane.xlu0 %449
        %v451 = vmul.f32 %v450, %v444
        %v452 = vadd.f32 %v451, 1e-05
        %v453 = vrsqrt.pop %v452
        %v454 = vmul.f32 %v446, %v453
        %v456 = vlaneseq
        %v457 = vshrl.u32 %v456, 7
        %v458 = vsub.s32 0, %v457
        %v459 = vrot.slane %v438, %v458
        %v461 = vmul.f32 %v454, %v459
        %v463 = vlaneseq
        %v464 = vshrl.u32 %v463, 7
        %v465 = vsub.s32 0, %v464
        %v466 = vrot.slane %v439, %v465
        %v468 = vadd.f32 %v461, %v466
        %v469 = vpack.c.bf16 %v468, %v468
        %v470 = vld [vmem:[%s3] sm:$0xf]
        %v471 = vld [vmem:[%s3 + $0x4] sm:$0xf]
        %v472 = vld [vmem:[%s3 + $0x8] sm:$0xf]
        %v473 = vld [vmem:[%s3 + $0xc] sm:$0xf]
        %v474 = vld [vmem:[%s4] sm:$0x1]
        %v476 = vlaneseq
        %v477 = vshrl.u32 %v476, 7
        %v478 = vsub.s32 0, %v477
        %v479 = vrot.slane %v474, %v478
        %v485 = vunpack.c.l.b16 %v470
        %v486 = vunpack.c.l.b16 %v471
        %v487 = vunpack.c.l.b16 %v472
        %v488 = vunpack.c.l.b16 %v473
        %v489 = vpack.c.b16 %v486, %v485
        %v490 = vpack.c.b16 %v488, %v487
        %v494 = vsel %vm440, %v469, 0
        %496 = vmatprep.subr.bf16.mxu0 0
        %497 = vmatpush1.bf16.msra.mxu0 %v489
        %498 = vmatprep.subr.bf16.mxu0 0
        %499 = vmatpush1.bf16.msra.mxu0 %v490
        %500 = vmatprep.subr.bf16.mxu0 0
        %501 = vmatpush1.bf16.msra.mxu0 0
        %502 = vmatprep.subr.bf16.mxu0 0
        %503 = vmatpush1.bf16.msra.mxu0 0
        %504 = vmatprep.subr.bf16.mxu0 0
        %505 = vmatpush1.bf16.msra.mxu0 0
        %506 = vmatprep.subr.bf16.mxu0 0
        %507 = vmatpush1.bf16.msra.mxu0 0
        %508 = vmatprep.subr.bf16.mxu0 0
        %509 = vmatpush1.bf16.msra.mxu0 0
        %510 = vmatprep.subr.bf16.mxu0 0
        %511 = vmatpush1.bf16.msra.mxu0 0
        %512 = vmatprep.subr.bf16.mxu0 0
        %513 = vmatpush1.bf16.msra.mxu0 0
        %514 = vmatprep.subr.bf16.mxu0 0
        %515 = vmatpush1.bf16.msra.mxu0 0
        %516 = vmatprep.subr.bf16.mxu0 0
        %517 = vmatpush1.bf16.msra.mxu0 0
        %518 = vmatprep.subr.bf16.mxu0 0
        %519 = vmatpush1.bf16.msra.mxu0 0
        %520 = vmatprep.subr.bf16.mxu0 0
        %521 = vmatpush1.bf16.msra.mxu0 0
        %522 = vmatprep.subr.bf16.mxu0 0
        %523 = vmatpush1.bf16.msra.mxu0 0
        %524 = vmatprep.subr.bf16.mxu0 0
        %525 = vmatpush1.bf16.msra.mxu0 0
        %526 = vmatprep.subr.bf16.mxu0 0
        %527 = vmatpush1.bf16.msra.mxu0 0
        %528 = vmatprep.mubr.bf16.mxu0 0
        %529 = vmatmul.mubr.bf16.gmra.mrb[0].mxu0 %v494
        %v530 = vpop.f32.mrb[0].mxu0
        %v531 = vadd.f32 %v479, %v530
        %v532 = vpop.f32.mrb[0].mxu0
        %v533 = vpop.f32.mrb[0].mxu0
        %v534 = vpop.f32.mrb[0].mxu0
        %535 = vdwg.mxu0
        %v536 = vpack.c.bf16 %v531, %v531
        %538 = vrot.lane.b32.xlu0 %v536, 96
        %v539 = vpop.permute.xlu0 %538
        %vm540 = vcmask 64512
        %v542 = vsel %vm540, %v536, 0
        %v545 = vsel %vm540, %v539, 0
        %547 = vmatprep.subr.bf16.mxu0 0
        %548 = vmatpush1.bf16.xpose.msra.mxu0 %v545
        %549 = vmatprep.subr.bf16.mxu0 0
        %550 = vmatpush1.bf16.xpose.msra.mxu0 0
        %551 = vmatprep.subr.bf16.mxu0 0
        %552 = vmatpush1.bf16.xpose.msra.mxu0 0
        %553 = vmatprep.subr.bf16.mxu0 0
        %554 = vmatpush1.bf16.xpose.msra.mxu0 0
        %555 = vmatprep.subr.bf16.mxu0 0
        %556 = vmatpush1.bf16.xpose.msra.mxu0 0
        %557 = vmatprep.subr.bf16.mxu0 0
        %558 = vmatpush1.bf16.xpose.msra.mxu0 0
        %559 = vmatprep.subr.bf16.mxu0 0
        %560 = vmatpush1.bf16.xpose.msra.mxu0 0
        %561 = vmatprep.subr.bf16.mxu0 0
        %562 = vmatpush1.bf16.xpose.msra.mxu0 0
        %563 = vmatprep.subr.bf16.mxu0 0
        %564 = vmatpush1.bf16.xpose.msra.mxu0 0
        %565 = vmatprep.subr.bf16.mxu0 0
        %566 = vmatpush1.bf16.xpose.msra.mxu0 0
        %567 = vmatprep.subr.bf16.mxu0 0
        %568 = vmatpush1.bf16.xpose.msra.mxu0 0
        %569 = vmatprep.subr.bf16.mxu0 0
        %570 = vmatpush1.bf16.xpose.msra.mxu0 0
        %571 = vmatprep.subr.bf16.mxu0 0
        %572 = vmatpush1.bf16.xpose.msra.mxu0 0
        %573 = vmatprep.subr.bf16.mxu0 0
        %574 = vmatpush1.bf16.xpose.msra.mxu0 0
        %575 = vmatprep.subr.bf16.mxu0 0
        %576 = vmatpush1.bf16.xpose.msra.mxu0 0
        %577 = vmatprep.subr.bf16.mxu0 0
        %578 = vmatpush1.bf16.xpose.msra.mxu0 0
        %579 = vmatprep.mubr.bf16.mxu0 0
        %580 = vmatmul.mubr.bf16.gmra.mrb[0].mxu0 %v542
        %v581 = vpop.f32.mrb[0].mxu0
        %v582 = vadd.f32 0.0, %v581
        %v583 = vpop.f32.mrb[0].mxu0
        %v584 = vpop.f32.mrb[0].mxu0
        %v585 = vpop.f32.mrb[0].mxu0
        %586 = vdwg.mxu0
        %v587 = vsel %vm540, %v582, -inf
        %588 = vmax.xlane.f32.xlu0 %v587
        %v589 = vpop.xlane.xlu0 %588
        %v590 = vsub.f32 %v582, %v589
        %v591 = vmul.f32 %v590, 1.442695
        %v592 = vpow.pop %v591
        %v593 = vsel %vm540, %v592, 0.0
        %594 = vadd.xlane.f32.xlu0 %v593
        %v595 = vpop.xlane.xlu0 %594
        %v596 = vrcp.pop %v595
        %v597 = vpack.c.bf16 %v592, %v592
        %598 = vrot.lane.b32.xlu0 %v536, 64
        %v599 = vpop.permute.xlu0 %598
        %v601 = vsel %vm540, %v597, 0
        %vm603 = vcmask 1043456
        %v605 = vsel %vm603, %v599, 0
        %607 = vmatprep.subr.bf16.mxu0 0
        %608 = vmatpush1.bf16.msra.mxu0 %v605
        %609 = vmatprep.subr.bf16.mxu0 0
        %610 = vmatpush1.bf16.msra.mxu0 0
        %611 = vmatprep.subr.bf16.mxu0 0
        %612 = vmatpush1.bf16.msra.mxu0 0
        %613 = vmatprep.subr.bf16.mxu0 0
        %614 = vmatpush1.bf16.msra.mxu0 0
        %615 = vmatprep.subr.bf16.mxu0 0
        %616 = vmatpush1.bf16.msra.mxu0 0
        %617 = vmatprep.subr.bf16.mxu0 0
        %618 = vmatpush1.bf16.msra.mxu0 0
        %619 = vmatprep.subr.bf16.mxu0 0
        %620 = vmatpush1.bf16.msra.mxu0 0
        %621 = vmatprep.subr.bf16.mxu0 0
        %622 = vmatpush1.bf16.msra.mxu0 0
        %623 = vmatprep.subr.bf16.mxu0 0
        %624 = vmatpush1.bf16.msra.mxu0 0
        %625 = vmatprep.subr.bf16.mxu0 0
        %626 = vmatpush1.bf16.msra.mxu0 0
        %627 = vmatprep.subr.bf16.mxu0 0
        %628 = vmatpush1.bf16.msra.mxu0 0
        %629 = vmatprep.subr.bf16.mxu0 0
        %630 = vmatpush1.bf16.msra.mxu0 0
        %631 = vmatprep.subr.bf16.mxu0 0
        %632 = vmatpush1.bf16.msra.mxu0 0
        %633 = vmatprep.subr.bf16.mxu0 0
        %634 = vmatpush1.bf16.msra.mxu0 0
        %635 = vmatprep.subr.bf16.mxu0 0
        %636 = vmatpush1.bf16.msra.mxu0 0
        %637 = vmatprep.subr.bf16.mxu0 0
        %638 = vmatpush1.bf16.msra.mxu0 0
        %639 = vmatprep.mubr.bf16.mxu0 0
        %640 = vmatmul.mubr.bf16.gmra.mrb[0].mxu0 %v601
        %v641 = vpop.f32.mrb[0].mxu0
        %v642 = vadd.f32 0.0, %v641
        %v643 = vpop.f32.mrb[0].mxu0
        %v644 = vpop.f32.mrb[0].mxu0
        %v645 = vpop.f32.mrb[0].mxu0
        %646 = vdwg.mxu0
        %v647 = vmul.f32 %v642, %v596
        %648 = vrot.lane.b32.xlu0 %v536, 120
        %v649 = vpop.permute.xlu0 %648
        %650 = vrot.lane.b32.xlu0 %v536, 88
        %v651 = vpop.permute.xlu0 %650
        %v653 = vsel %vm540, %v649, 0
        %v656 = vsel %vm540, %v651, 0
        %658 = vmatprep.subr.bf16.mxu0 0
        %659 = vmatpush1.bf16.xpose.msra.mxu0 %v656
        %660 = vmatprep.subr.bf16.mxu0 0
        %661 = vmatpush1.bf16.xpose.msra.mxu0 0
        %662 = vmatprep.subr.bf16.mxu0 0
        %663 = vmatpush1.bf16.xpose.msra.mxu0 0
        %664 = vmatprep.subr.bf16.mxu0 0
        %665 = vmatpush1.bf16.xpose.msra.mxu0 0
        %666 = vmatprep.subr.bf16.mxu0 0
        %667 = vmatpush1.bf16.xpose.msra.mxu0 0
        %668 = vmatprep.subr.bf16.mxu0 0
        %669 = vmatpush1.bf16.xpose.msra.mxu0 0
        %670 = vmatprep.subr.bf16.mxu0 0
        %671 = vmatpush1.bf16.xpose.msra.mxu0 0
        %672 = vmatprep.subr.bf16.mxu0 0
        %673 = vmatpush1.bf16.xpose.msra.mxu0 0
        %674 = vmatprep.subr.bf16.mxu0 0
        %675 = vmatpush1.bf16.xpose.msra.mxu0 0
        %676 = vmatprep.subr.bf16.mxu0 0
        %677 = vmatpush1.bf16.xpose.msra.mxu0 0
        %678 = vmatprep.subr.bf16.mxu0 0
        %679 = vmatpush1.bf16.xpose.msra.mxu0 0
        %680 = vmatprep.subr.bf16.mxu0 0
        %681 = vmatpush1.bf16.xpose.msra.mxu0 0
        %682 = vmatprep.subr.bf16.mxu0 0
        %683 = vmatpush1.bf16.xpose.msra.mxu0 0
        %684 = vmatprep.subr.bf16.mxu0 0
        %685 = vmatpush1.bf16.xpose.msra.mxu0 0
        %686 = vmatprep.subr.bf16.mxu0 0
        %687 = vmatpush1.bf16.xpose.msra.mxu0 0
        %688 = vmatprep.subr.bf16.mxu0 0
        %689 = vmatpush1.bf16.xpose.msra.mxu0 0
        %690 = vmatprep.mubr.bf16.mxu0 0
        %691 = vmatmul.mubr.bf16.gmra.mrb[0].mxu0 %v653
        %v692 = vpop.f32.mrb[0].mxu0
        %v693 = vadd.f32 0.0, %v692
        %v694 = vpop.f32.mrb[0].mxu0
        %v695 = vpop.f32.mrb[0].mxu0
        %v696 = vpop.f32.mrb[0].mxu0
        %697 = vdwg.mxu0
        %v698 = vsel %vm540, %v693, -inf
        %699 = vmax.xlane.f32.xlu0 %v698
        %v700 = vpop.xlane.xlu0 %699
        %v701 = vsub.f32 %v693, %v700
        %v702 = vmul.f32 %v701, 1.442695
        %v703 = vpow.pop %v702
        %v704 = vsel %vm540, %v703, 0.0
        %705 = vadd.xlane.f32.xlu0 %v704
        %v706 = vpop.xlane.xlu0 %705
        %v707 = vrcp.pop %v706
        %v708 = vpack.c.bf16 %v703, %v703
        %709 = vrot.lane.b32.xlu0 %v536, 56
        %v710 = vpop.permute.xlu0 %709
        %v712 = vsel %vm540, %v708, 0
        %v715 = vsel %vm603, %v710, 0
        %717 = vmatprep.subr.bf16.mxu0 0
        %718 = vmatpush1.bf16.msra.mxu0 %v715
        %719 = vmatprep.subr.bf16.mxu0 0
        %720 = vmatpush1.bf16.msra.mxu0 0
        %721 = vmatprep.subr.bf16.mxu0 0
        %722 = vmatpush1.bf16.msra.mxu0 0
        %723 = vmatprep.subr.bf16.mxu0 0
        %724 = vmatpush1.bf16.msra.mxu0 0
        %725 = vmatprep.subr.bf16.mxu0 0
        %726 = vmatpush1.bf16.msra.mxu0 0
        %727 = vmatprep.subr.bf16.mxu0 0
        %728 = vmatpush1.bf16.msra.mxu0 0
        %729 = vmatprep.subr.bf16.mxu0 0
        %730 = vmatpush1.bf16.msra.mxu0 0
        %731 = vmatprep.subr.bf16.mxu0 0
        %732 = vmatpush1.bf16.msra.mxu0 0
        %733 = vmatprep.subr.bf16.mxu0 0
        %734 = vmatpush1.bf16.msra.mxu0 0
        %735 = vmatprep.subr.bf16.mxu0 0
        %736 = vmatpush1.bf16.msra.mxu0 0
        %737 = vmatprep.subr.bf16.mxu0 0
        %738 = vmatpush1.bf16.msra.mxu0 0
        %739 = vmatprep.subr.bf16.mxu0 0
        %740 = vmatpush1.bf16.msra.mxu0 0
        %741 = vmatprep.subr.bf16.mxu0 0
        %742 = vmatpush1.bf16.msra.mxu0 0
        %743 = vmatprep.subr.bf16.mxu0 0
        %744 = vmatpush1.bf16.msra.mxu0 0
        %745 = vmatprep.subr.bf16.mxu0 0
        %746 = vmatpush1.bf16.msra.mxu0 0
        %747 = vmatprep.subr.bf16.mxu0 0
        %748 = vmatpush1.bf16.msra.mxu0 0
        %749 = vmatprep.mubr.bf16.mxu0 0
        %750 = vmatmul.mubr.bf16.gmra.mrb[0].mxu0 %v712
        %v751 = vpop.f32.mrb[0].mxu0
        %v752 = vadd.f32 0.0, %v751
        %v753 = vpop.f32.mrb[0].mxu0
        %v754 = vpop.f32.mrb[0].mxu0
        %v755 = vpop.f32.mrb[0].mxu0
        %756 = vdwg.mxu0
        %v757 = vmul.f32 %v752, %v707
        %758 = vrot.lane.b32.xlu0 %v536, 112
        %v759 = vpop.permute.xlu0 %758
        %760 = vrot.lane.b32.xlu0 %v536, 80
        %v761 = vpop.permute.xlu0 %760
        %v763 = vsel %vm540, %v759, 0
        %v766 = vsel %vm540, %v761, 0
        %768 = vmatprep.subr.bf16.mxu0 0
        %769 = vmatpush1.bf16.xpose.msra.mxu0 %v766
        %770 = vmatprep.subr.bf16.mxu0 0
        %771 = vmatpush1.bf16.xpose.msra.mxu0 0
        %772 = vmatprep.subr.bf16.mxu0 0
        %773 = vmatpush1.bf16.xpose.msra.mxu0 0
        %774 = vmatprep.subr.bf16.mxu0 0
        %775 = vmatpush1.bf16.xpose.msra.mxu0 0
        %776 = vmatprep.subr.bf16.mxu0 0
        %777 = vmatpush1.bf16.xpose.msra.mxu0 0
        %778 = vmatprep.subr.bf16.mxu0 0
        %779 = vmatpush1.bf16.xpose.msra.mxu0 0
        %780 = vmatprep.subr.bf16.mxu0 0
        %781 = vmatpush1.bf16.xpose.msra.mxu0 0
        %782 = vmatprep.subr.bf16.mxu0 0
        %783 = vmatpush1.bf16.xpose.msra.mxu0 0
        %784 = vmatprep.subr.bf16.mxu0 0
        %785 = vmatpush1.bf16.xpose.msra.mxu0 0
        %786 = vmatprep.subr.bf16.mxu0 0
        %787 = vmatpush1.bf16.xpose.msra.mxu0 0
        %788 = vmatprep.subr.bf16.mxu0 0
        %789 = vmatpush1.bf16.xpose.msra.mxu0 0
        %790 = vmatprep.subr.bf16.mxu0 0
        %791 = vmatpush1.bf16.xpose.msra.mxu0 0
        %792 = vmatprep.subr.bf16.mxu0 0
        %793 = vmatpush1.bf16.xpose.msra.mxu0 0
        %794 = vmatprep.subr.bf16.mxu0 0
        %795 = vmatpush1.bf16.xpose.msra.mxu0 0
        %796 = vmatprep.subr.bf16.mxu0 0
        %797 = vmatpush1.bf16.xpose.msra.mxu0 0
        %798 = vmatprep.subr.bf16.mxu0 0
        %799 = vmatpush1.bf16.xpose.msra.mxu0 0
        %800 = vmatprep.mubr.bf16.mxu0 0
        %801 = vmatmul.mubr.bf16.gmra.mrb[0].mxu0 %v763
        %v802 = vpop.f32.mrb[0].mxu0
        %v803 = vadd.f32 0.0, %v802
        %v804 = vpop.f32.mrb[0].mxu0
        %v805 = vpop.f32.mrb[0].mxu0
        %v806 = vpop.f32.mrb[0].mxu0
        %807 = vdwg.mxu0
        %v808 = vsel %vm540, %v803, -inf
        %809 = vmax.xlane.f32.xlu0 %v808
        %v810 = vpop.xlane.xlu0 %809
        %v811 = vsub.f32 %v803, %v810
        %v812 = vmul.f32 %v811, 1.442695
        %v813 = vpow.pop %v812
        %v814 = vsel %vm540, %v813, 0.0
        %815 = vadd.xlane.f32.xlu0 %v814
        %v816 = vpop.xlane.xlu0 %815
        %v817 = vrcp.pop %v816
        %v818 = vpack.c.bf16 %v813, %v813
        %819 = vrot.lane.b32.xlu0 %v536, 48
        %v820 = vpop.permute.xlu0 %819
        %v822 = vsel %vm540, %v818, 0
        %v825 = vsel %vm603, %v820, 0
        %827 = vmatprep.subr.bf16.mxu0 0
        %828 = vmatpush1.bf16.msra.mxu0 %v825
        %829 = vmatprep.subr.bf16.mxu0 0
        %830 = vmatpush1.bf16.msra.mxu0 0
        %831 = vmatprep.subr.bf16.mxu0 0
        %832 = vmatpush1.bf16.msra.mxu0 0
        %833 = vmatprep.subr.bf16.mxu0 0
        %834 = vmatpush1.bf16.msra.mxu0 0
        %835 = vmatprep.subr.bf16.mxu0 0
        %836 = vmatpush1.bf16.msra.mxu0 0
        %837 = vmatprep.subr.bf16.mxu0 0
        %838 = vmatpush1.bf16.msra.mxu0 0
        %839 = vmatprep.subr.bf16.mxu0 0
        %840 = vmatpush1.bf16.msra.mxu0 0
        %841 = vmatprep.subr.bf16.mxu0 0
        %842 = vmatpush1.bf16.msra.mxu0 0
        %843 = vmatprep.subr.bf16.mxu0 0
        %844 = vmatpush1.bf16.msra.mxu0 0
        %845 = vmatprep.subr.bf16.mxu0 0
        %846 = vmatpush1.bf16.msra.mxu0 0
        %847 = vmatprep.subr.bf16.mxu0 0
        %848 = vmatpush1.bf16.msra.mxu0 0
        %849 = vmatprep.subr.bf16.mxu0 0
        %850 = vmatpush1.bf16.msra.mxu0 0
        %851 = vmatprep.subr.bf16.mxu0 0
        %852 = vmatpush1.bf16.msra.mxu0 0
        %853 = vmatprep.subr.bf16.mxu0 0
        %854 = vmatpush1.bf16.msra.mxu0 0
        %855 = vmatprep.subr.bf16.mxu0 0
        %856 = vmatpush1.bf16.msra.mxu0 0
        %857 = vmatprep.subr.bf16.mxu0 0
        %858 = vmatpush1.bf16.msra.mxu0 0
        %859 = vmatprep.mubr.bf16.mxu0 0
        %860 = vmatmul.mubr.bf16.gmra.mrb[0].mxu0 %v822
        %v861 = vpop.f32.mrb[0].mxu0
        %v862 = vadd.f32 0.0, %v861
        %v863 = vpop.f32.mrb[0].mxu0
        %v864 = vpop.f32.mrb[0].mxu0
        %v865 = vpop.f32.mrb[0].mxu0
        %866 = vdwg.mxu0
        %v867 = vmul.f32 %v862, %v817
        %868 = vrot.lane.b32.xlu0 %v536, 104
        %v869 = vpop.permute.xlu0 %868
        %870 = vrot.lane.b32.xlu0 %v536, 72
        %v871 = vpop.permute.xlu0 %870
        %v873 = vsel %vm540, %v869, 0
        %v876 = vsel %vm540, %v871, 0
        %878 = vmatprep.subr.bf16.mxu0 0
        %879 = vmatpush1.bf16.xpose.msra.mxu0 %v876
        %880 = vmatprep.subr.bf16.mxu0 0
        %881 = vmatpush1.bf16.xpose.msra.mxu0 0
        %882 = vmatprep.subr.bf16.mxu0 0
        %883 = vmatpush1.bf16.xpose.msra.mxu0 0
        %884 = vmatprep.subr.bf16.mxu0 0
        %885 = vmatpush1.bf16.xpose.msra.mxu0 0
        %886 = vmatprep.subr.bf16.mxu0 0
        %887 = vmatpush1.bf16.xpose.msra.mxu0 0
        %888 = vmatprep.subr.bf16.mxu0 0
        %889 = vmatpush1.bf16.xpose.msra.mxu0 0
        %890 = vmatprep.subr.bf16.mxu0 0
        %891 = vmatpush1.bf16.xpose.msra.mxu0 0
        %892 = vmatprep.subr.bf16.mxu0 0
        %893 = vmatpush1.bf16.xpose.msra.mxu0 0
        %894 = vmatprep.subr.bf16.mxu0 0
        %895 = vmatpush1.bf16.xpose.msra.mxu0 0
        %896 = vmatprep.subr.bf16.mxu0 0
        %897 = vmatpush1.bf16.xpose.msra.mxu0 0
        %898 = vmatprep.subr.bf16.mxu0 0
        %899 = vmatpush1.bf16.xpose.msra.mxu0 0
        %900 = vmatprep.subr.bf16.mxu0 0
        %901 = vmatpush1.bf16.xpose.msra.mxu0 0
        %902 = vmatprep.subr.bf16.mxu0 0
        %903 = vmatpush1.bf16.xpose.msra.mxu0 0
        %904 = vmatprep.subr.bf16.mxu0 0
        %905 = vmatpush1.bf16.xpose.msra.mxu0 0
        %906 = vmatprep.subr.bf16.mxu0 0
        %907 = vmatpush1.bf16.xpose.msra.mxu0 0
        %908 = vmatprep.subr.bf16.mxu0 0
        %909 = vmatpush1.bf16.xpose.msra.mxu0 0
        %910 = vmatprep.mubr.bf16.mxu0 0
        %911 = vmatmul.mubr.bf16.gmra.mrb[0].mxu0 %v873
        %v912 = vpop.f32.mrb[0].mxu0
        %v913 = vadd.f32 0.0, %v912
        %v914 = vpop.f32.mrb[0].mxu0
        %v915 = vpop.f32.mrb[0].mxu0
        %v916 = vpop.f32.mrb[0].mxu0
        %917 = vdwg.mxu0
        %v918 = vsel %vm540, %v913, -inf
        %919 = vmax.xlane.f32.xlu0 %v918
        %v920 = vpop.xlane.xlu0 %919
        %v921 = vsub.f32 %v913, %v920
        %v922 = vmul.f32 %v921, 1.442695
        %v923 = vpow.pop %v922
        %v924 = vsel %vm540, %v923, 0.0
        %925 = vadd.xlane.f32.xlu0 %v924
        %v926 = vpop.xlane.xlu0 %925
        %v927 = vrcp.pop %v926
        %v928 = vpack.c.bf16 %v923, %v923
        %929 = vrot.lane.b32.xlu0 %v536, 40
        %v930 = vpop.permute.xlu0 %929
        %v932 = vsel %vm540, %v928, 0
        %v935 = vsel %vm603, %v930, 0
        %937 = vmatprep.subr.bf16.mxu0 0
        %938 = vmatpush1.bf16.msra.mxu0 %v935
        %939 = vmatprep.subr.bf16.mxu0 0
        %940 = vmatpush1.bf16.msra.mxu0 0
        %941 = vmatprep.subr.bf16.mxu0 0
        %942 = vmatpush1.bf16.msra.mxu0 0
        %943 = vmatprep.subr.bf16.mxu0 0
        %944 = vmatpush1.bf16.msra.mxu0 0
        %945 = vmatprep.subr.bf16.mxu0 0
        %946 = vmatpush1.bf16.msra.mxu0 0
        %947 = vmatprep.subr.bf16.mxu0 0
        %948 = vmatpush1.bf16.msra.mxu0 0
        %949 = vmatprep.subr.bf16.mxu0 0
        %950 = vmatpush1.bf16.msra.mxu0 0
        %951 = vmatprep.subr.bf16.mxu0 0
        %952 = vmatpush1.bf16.msra.mxu0 0
        %953 = vmatprep.subr.bf16.mxu0 0
        %954 = vmatpush1.bf16.msra.mxu0 0
        %955 = vmatprep.subr.bf16.mxu0 0
        %956 = vmatpush1.bf16.msra.mxu0 0
        %957 = vmatprep.subr.bf16.mxu0 0
        %958 = vmatpush1.bf16.msra.mxu0 0
        %959 = vmatprep.subr.bf16.mxu0 0
        %960 = vmatpush1.bf16.msra.mxu0 0
        %961 = vmatprep.subr.bf16.mxu0 0
        %962 = vmatpush1.bf16.msra.mxu0 0
        %963 = vmatprep.subr.bf16.mxu0 0
        %964 = vmatpush1.bf16.msra.mxu0 0
        %965 = vmatprep.subr.bf16.mxu0 0
        %966 = vmatpush1.bf16.msra.mxu0 0
        %967 = vmatprep.subr.bf16.mxu0 0
        %968 = vmatpush1.bf16.msra.mxu0 0
        %969 = vmatprep.mubr.bf16.mxu0 0
        %970 = vmatmul.mubr.bf16.gmra.mrb[0].mxu0 %v932
        %v971 = vpop.f32.mrb[0].mxu0
        %v972 = vadd.f32 0.0, %v971
        %v973 = vpop.f32.mrb[0].mxu0
        %v974 = vpop.f32.mrb[0].mxu0
        %v975 = vpop.f32.mrb[0].mxu0
        %976 = vdwg.mxu0
        %v977 = vmul.f32 %v972, %v927
        %979 = vrot.lane.b32.xlu0 %v757, 8
        %v980 = vpop.permute.xlu0 %979
        %983 = vrot.lane.b32.xlu0 %v867, 16
        %v984 = vpop.permute.xlu0 %983
        %987 = vrot.lane.b32.xlu0 %v977, 24
        %v988 = vpop.permute.xlu0 %987
        %v990 = vsel %vm540, %v647, %v980
        %vm991 = vcmask 130048
        %v992 = vsel %vm991, %v990, %v984
        %vm993 = vcmask 195584
        %v994 = vsel %vm993, %v992, %v988
        %v995 = vpack.c.bf16 %v994, %v994
        %v996 = vld [vmem:[%s5] sm:$0xf]
        %v997 = vld [vmem:[%s5 + $0x4] sm:$0xf]
        %v998 = vld [vmem:[%s5 + $0x8] sm:$0xf]
        %v999 = vld [vmem:[%s5 + $0xc] sm:$0xf]
        %v1000 = vld [vmem:[%s6] sm:$0x1]
        %v1002 = vlaneseq
        %v1003 = vshrl.u32 %v1002, 7
        %v1004 = vsub.s32 0, %v1003
        %v1005 = vrot.slane %v1000, %v1004
        %v1011 = vunpack.c.l.b16 %v996
        %v1012 = vunpack.c.l.b16 %v997
        %v1013 = vunpack.c.l.b16 %v998
        %v1014 = vunpack.c.l.b16 %v999
        %v1015 = vpack.c.b16 %v1012, %v1011
        %v1016 = vpack.c.b16 %v1014, %v1013
        %v1020 = vsel %vm440, %v995, 0
        %1022 = vmatprep.subr.bf16.mxu0 0
        %1023 = vmatpush1.bf16.msra.mxu0 %v1015
        %1024 = vmatprep.subr.bf16.mxu0 0
        %1025 = vmatpush1.bf16.msra.mxu0 %v1016
        %1026 = vmatprep.subr.bf16.mxu0 0
        %1027 = vmatpush1.bf16.msra.mxu0 0
        %1028 = vmatprep.subr.bf16.mxu0 0
        %1029 = vmatpush1.bf16.msra.mxu0 0
        %1030 = vmatprep.subr.bf16.mxu0 0
        %1031 = vmatpush1.bf16.msra.mxu0 0
        %1032 = vmatprep.subr.bf16.mxu0 0
        %1033 = vmatpush1.bf16.msra.mxu0 0
        %1034 = vmatprep.subr.bf16.mxu0 0
        %1035 = vmatpush1.bf16.msra.mxu0 0
        %1036 = vmatprep.subr.bf16.mxu0 0
        %1037 = vmatpush1.bf16.msra.mxu0 0
        %1038 = vmatprep.subr.bf16.mxu0 0
        %1039 = vmatpush1.bf16.msra.mxu0 0
        %1040 = vmatprep.subr.bf16.mxu0 0
        %1041 = vmatpush1.bf16.msra.mxu0 0
        %1042 = vmatprep.subr.bf16.mxu0 0
        %1043 = vmatpush1.bf16.msra.mxu0 0
        %1044 = vmatprep.subr.bf16.mxu0 0
        %1045 = vmatpush1.bf16.msra.mxu0 0
        %1046 = vmatprep.subr.bf16.mxu0 0
        %1047 = vmatpush1.bf16.msra.mxu0 0
        %1048 = vmatprep.subr.bf16.mxu0 0
        %1049 = vmatpush1.bf16.msra.mxu0 0
        %1050 = vmatprep.subr.bf16.mxu0 0
        %1051 = vmatpush1.bf16.msra.mxu0 0
        %1052 = vmatprep.subr.bf16.mxu0 0
        %1053 = vmatpush1.bf16.msra.mxu0 0
        %1054 = vmatprep.mubr.bf16.mxu0 0
        %1055 = vmatmul.mubr.bf16.gmra.mrb[0].mxu0 %v1020
        %v1056 = vpop.f32.mrb[0].mxu0
        %v1057 = vadd.f32 %v1005, %v1056
        %v1058 = vpop.f32.mrb[0].mxu0
        %v1059 = vpop.f32.mrb[0].mxu0
        %v1060 = vpop.f32.mrb[0].mxu0
        %1061 = vdwg.mxu0
        %v1062 = vadd.f32 %v437, %v1057
        %v1063 = vld [vmem:[%s7] sm:$0x1]
        %v1064 = vld [vmem:[%s8] sm:$0x1]
        %v1065 = vsel %vm440, %v1062, 0.0
        %1066 = vadd.xlane.f32.xlu0 %v1065
        %v1067 = vpop.xlane.xlu0 %1066
        %v1068 = vmul.f32 %v1067, %v444
        %v1069 = vsub.f32 %v1062, %v1068
        %v1070 = vmul.f32 %v1069, %v1069
        %v1071 = vsel %vm440, %v1070, 0.0
        %1072 = vadd.xlane.f32.xlu0 %v1071
        %v1073 = vpop.xlane.xlu0 %1072
        %v1074 = vmul.f32 %v1073, %v444
        %v1075 = vadd.f32 %v1074, 1e-05
        %v1076 = vrsqrt.pop %v1075
        %v1077 = vmul.f32 %v1069, %v1076
        %v1079 = vlaneseq
        %v1080 = vshrl.u32 %v1079, 7
        %v1081 = vsub.s32 0, %v1080
        %v1082 = vrot.slane %v1063, %v1081
        %v1084 = vmul.f32 %v1077, %v1082
        %v1086 = vlaneseq
        %v1087 = vshrl.u32 %v1086, 7
        %v1088 = vsub.s32 0, %v1087
        %v1089 = vrot.slane %v1064, %v1088
        %v1091 = vadd.f32 %v1084, %v1089
        %v1092 = vpack.c.bf16 %v1091, %v1091
        %v1093 = vld [vmem:[%s9] sm:$0xf]
        %v1094 = vld [vmem:[%s9 + $0x4] sm:$0xf]
        %v1095 = vld [vmem:[%s9 + $0x8] sm:$0xf]
        %v1096 = vld [vmem:[%s9 + $0xc] sm:$0xf]
        %v1097 = vld [vmem:[%s10] sm:$0x1]
        %v1099 = vlaneseq
        %v1100 = vshrl.u32 %v1099, 7
        %v1101 = vsub.s32 0, %v1100
        %v1102 = vrot.slane %v1097, %v1101
        %v1108 = vunpack.c.l.b16 %v1093
        %v1109 = vunpack.c.l.b16 %v1094
        %v1110 = vunpack.c.l.b16 %v1095
        %v1111 = vunpack.c.l.b16 %v1096
        %v1112 = vpack.c.b16 %v1109, %v1108
        %v1113 = vpack.c.b16 %v1111, %v1110
        %v1117 = vsel %vm440, %v1092, 0
        %1119 = vmatprep.subr.bf16.mxu0 0
        %1120 = vmatpush1.bf16.msra.mxu0 %v1112
        %1121 = vmatprep.subr.bf16.mxu0 0
        %1122 = vmatpush1.bf16.msra.mxu0 %v1113
        %1123 = vmatprep.subr.bf16.mxu0 0
        %1124 = vmatpush1.bf16.msra.mxu0 0
        %1125 = vmatprep.subr.bf16.mxu0 0
        %1126 = vmatpush1.bf16.msra.mxu0 0
        %1127 = vmatprep.subr.bf16.mxu0 0
        %1128 = vmatpush1.bf16.msra.mxu0 0
        %1129 = vmatprep.subr.bf16.mxu0 0
        %1130 = vmatpush1.bf16.msra.mxu0 0
        %1131 = vmatprep.subr.bf16.mxu0 0
        %1132 = vmatpush1.bf16.msra.mxu0 0
        %1133 = vmatprep.subr.bf16.mxu0 0
        %1134 = vmatpush1.bf16.msra.mxu0 0
        %1135 = vmatprep.subr.bf16.mxu0 0
        %1136 = vmatpush1.bf16.msra.mxu0 0
        %1137 = vmatprep.subr.bf16.mxu0 0
        %1138 = vmatpush1.bf16.msra.mxu0 0
        %1139 = vmatprep.subr.bf16.mxu0 0
        %1140 = vmatpush1.bf16.msra.mxu0 0
        %1141 = vmatprep.subr.bf16.mxu0 0
        %1142 = vmatpush1.bf16.msra.mxu0 0
        %1143 = vmatprep.subr.bf16.mxu0 0
        %1144 = vmatpush1.bf16.msra.mxu0 0
        %1145 = vmatprep.subr.bf16.mxu0 0
        %1146 = vmatpush1.bf16.msra.mxu0 0
        %1147 = vmatprep.subr.bf16.mxu0 0
        %1148 = vmatpush1.bf16.msra.mxu0 0
        %1149 = vmatprep.subr.bf16.mxu0 0
        %1150 = vmatpush1.bf16.msra.mxu0 0
        %1151 = vmatprep.mubr.bf16.mxu0 0
        %1152 = vmatmul.mubr.bf16.gmra.mrb[0].mxu0 %v1117
        %v1153 = vpop.f32.mrb[0].mxu0
        %v1154 = vadd.f32 %v1102, %v1153
        %v1155 = vpop.f32.mrb[0].mxu0
        %v1156 = vpop.f32.mrb[0].mxu0
        %v1157 = vpop.f32.mrb[0].mxu0
        %1158 = vdwg.mxu0
        %v1159 = vmul.f32 %v1154, 1.702
        %v1160 = vxor.u32 %v1159, 2147483648
        %v1161 = vmul.f32 %v1160, 1.442695
        %v1162 = vpow.pop %v1161
        %v1163 = vadd.f32 %v1162, 1.0
        %v1164 = vrcp.pop %v1163
        %v1165 = vmul.f32 1.0, %v1164
        %v1166 = vmul.f32 %v1154, %v1165
        %v1167 = vpack.c.bf16 %v1166, %v1166
        %v1168 = vld [vmem:[%s11] sm:$0xf]
        %v1169 = vld [vmem:[%s11 + $0x4] sm:$0xf]
        %v1170 = vld [vmem:[%s11 + $0x8] sm:$0xf]
        %v1171 = vld [vmem:[%s11 + $0xc] sm:$0xf]
        %v1172 = vld [vmem:[%s11 + $0x10] sm:$0xf]
        %v1173 = vld [vmem:[%s11 + $0x14] sm:$0xf]
        %v1174 = vld [vmem:[%s11 + $0x18] sm:$0xf]
        %v1175 = vld [vmem:[%s11 + $0x1c] sm:$0xf]
        %v1176 = vld [vmem:[%s11 + $0x20] sm:$0xf]
        %v1177 = vld [vmem:[%s11 + $0x24] sm:$0xf]
        %v1178 = vld [vmem:[%s11 + $0x28] sm:$0xf]
        %v1179 = vld [vmem:[%s11 + $0x2c] sm:$0xf]
        %v1180 = vld [vmem:[%s11 + $0x30] sm:$0xf]
        %v1181 = vld [vmem:[%s11 + $0x34] sm:$0xf]
        %v1182 = vld [vmem:[%s11 + $0x38] sm:$0xf]
        %v1183 = vld [vmem:[%s11 + $0x3c] sm:$0xf]
        %v1184 = vld [vmem:[%s12] sm:$0x1]
        %v1186 = vlaneseq
        %v1187 = vshrl.u32 %v1186, 7
        %v1188 = vsub.s32 0, %v1187
        %v1189 = vrot.slane %v1184, %v1188
        %v1207 = vunpack.c.l.b16 %v1168
        %v1208 = vunpack.c.l.b16 %v1169
        %v1209 = vunpack.c.l.b16 %v1170
        %v1210 = vunpack.c.l.b16 %v1171
        %v1211 = vunpack.c.l.b16 %v1172
        %v1212 = vunpack.c.l.b16 %v1173
        %v1213 = vunpack.c.l.b16 %v1174
        %v1214 = vunpack.c.l.b16 %v1175
        %v1215 = vunpack.c.l.b16 %v1176
        %v1216 = vunpack.c.l.b16 %v1177
        %v1217 = vunpack.c.l.b16 %v1178
        %v1218 = vunpack.c.l.b16 %v1179
        %v1219 = vunpack.c.l.b16 %v1180
        %v1220 = vunpack.c.l.b16 %v1181
        %v1221 = vunpack.c.l.b16 %v1182
        %v1222 = vunpack.c.l.b16 %v1183
        %v1223 = vpack.c.b16 %v1208, %v1207
        %v1224 = vpack.c.b16 %v1210, %v1209
        %v1225 = vpack.c.b16 %v1212, %v1211
        %v1226 = vpack.c.b16 %v1214, %v1213
        %v1227 = vpack.c.b16 %v1216, %v1215
        %v1228 = vpack.c.b16 %v1218, %v1217
        %v1229 = vpack.c.b16 %v1220, %v1219
        %v1230 = vpack.c.b16 %v1222, %v1221
        %1239 = vmatprep.subr.bf16.mxu0 0
        %1240 = vmatpush1.bf16.msra.mxu0 %v1223
        %1241 = vmatprep.subr.bf16.mxu0 0
        %1242 = vmatpush1.bf16.msra.mxu0 %v1224
        %1243 = vmatprep.subr.bf16.mxu0 0
        %1244 = vmatpush1.bf16.msra.mxu0 %v1225
        %1245 = vmatprep.subr.bf16.mxu0 0
        %1246 = vmatpush1.bf16.msra.mxu0 %v1226
        %1247 = vmatprep.subr.bf16.mxu0 0
        %1248 = vmatpush1.bf16.msra.mxu0 %v1227
        %1249 = vmatprep.subr.bf16.mxu0 0
        %1250 = vmatpush1.bf16.msra.mxu0 %v1228
        %1251 = vmatprep.subr.bf16.mxu0 0
        %1252 = vmatpush1.bf16.msra.mxu0 %v1229
        %1253 = vmatprep.subr.bf16.mxu0 0
        %1254 = vmatpush1.bf16.msra.mxu0 %v1230
        %1255 = vmatprep.subr.bf16.mxu0 0
        %1256 = vmatpush1.bf16.msra.mxu0 0
        %1257 = vmatprep.subr.bf16.mxu0 0
        %1258 = vmatpush1.bf16.msra.mxu0 0
        %1259 = vmatprep.subr.bf16.mxu0 0
        %1260 = vmatpush1.bf16.msra.mxu0 0
        %1261 = vmatprep.subr.bf16.mxu0 0
        %1262 = vmatpush1.bf16.msra.mxu0 0
        %1263 = vmatprep.subr.bf16.mxu0 0
        %1264 = vmatpush1.bf16.msra.mxu0 0
        %1265 = vmatprep.subr.bf16.mxu0 0
        %1266 = vmatpush1.bf16.msra.mxu0 0
        %1267 = vmatprep.subr.bf16.mxu0 0
        %1268 = vmatpush1.bf16.msra.mxu0 0
        %1269 = vmatprep.subr.bf16.mxu0 0
        %1270 = vmatpush1.bf16.msra.mxu0 0
        %1271 = vmatprep.mubr.bf16.mxu0 0
        %1272 = vmatmul.mubr.bf16.gmra.mrb[0].mxu0 %v1167
        %v1273 = vpop.f32.mrb[0].mxu0
        %v1274 = vadd.f32 %v1189, %v1273
        %v1275 = vpop.f32.mrb[0].mxu0
        %v1276 = vpop.f32.mrb[0].mxu0
        %v1277 = vpop.f32.mrb[0].mxu0
        %1278 = vdwg.mxu0
        %v1279 = vadd.f32 %v1062, %v1274
        %1280 = vst.msk [vmem:[%s431] sm:$0xff] %vm440, %v1279
        %s1281 = sand.u32 %s313, 1
        %s1282 = scalar_lea.sflag [#allocation3], %s1281
        %s1283 = sand.u32 %s313, 1
        %s1284 = smul.addr %s1283, 8
        %s1285 = scalar_lea.vmem [#allocation2], %s1284
        // Predicated region
        $region73: #{tpu_custom_call.1} parent=71 // pred_check
          %p1286 = pneg %p323
        $region74: #{tpu_custom_call.1} parent=71 // pred_check_branch
          %1288 = sbr.rel (%p1286) target = $region76
        $region75: #{tpu_custom_call.1} parent=71 // pred_region
          %s1290 = ssub.s32 128, 128
          %1291 = vsyncadd %s1282, %s1290
          %s1292 = smul.addr %s27, 128
          %s1293 = scalar_lea.hbm %s13, %s1292
          %s1295 = sshll.u32 %s1285, 4
          %s1296 = int_to_ptr.vmem [resolvable:$true] %s1295
          %1298 = dma.vmem_to_hbm [thread:$0]  %s1296, 128, %s1293, %s1282
        $region76: #{tpu_custom_call.1} parent=71 // pred_fallthru
          _
      $region72: #{tpu_custom_call.1} parent=5 // pred_fallthru
        _
      %p1299 = scmp.le.s32.totalorder 2, %s22
      // Predicated region
      $region77: #{tpu_custom_call.1} parent=5 // pred_check
        %p1300 = pneg %p1299
      $region78: #{tpu_custom_call.1} parent=5 // pred_check_branch
        %1302 = sbr.rel (%p1300) target = $region80
      $region79: #{tpu_custom_call.1} parent=5 // pred_region
        %s1303 = ssub.s32 %s22, 2
        // Predicated region
        $region81: #{tpu_custom_call.1} parent=79 // pred_check
          %p1304 = pneg %p329
        $region82: #{tpu_custom_call.1} parent=79 // pred_check_branch
          %1306 = sbr.rel (%p1304) target = $region84
        $region83: #{tpu_custom_call.1} parent=79 // pred_region
          %s1307 = sand.u32 %s314, 1
          %s1308 = scalar_lea.sflag [#allocation3], %s1307
          %s1309 = sand.u32 %s314, 1
          %s1310 = smul.addr %s1309, 8
          %s1311 = scalar_lea.vmem [#allocation2], %s1310
          %1312 = dma.done %s1308, 128
        $region84: #{tpu_custom_call.1} parent=79 // pred_fallthru
          _
      $region80: #{tpu_custom_call.1} parent=5 // pred_fallthru
        _
    $region6: #{tpu_custom_call.1} parent=1 // loop_footer
      %s26 = sadd.s32 1, %s22
    $region7: #{tpu_custom_call.1} parent=1 // loop_footer_branch
      %21 = sbr.rel target = $region3
    $region8: #{tpu_custom_call.1} parent=1 // loop_exit
      _
    %1313 = vsyncpa [#allocation3], 1
    %s1314 = scalar_lea.sflag [#allocation3], 1
    %1315 = vsyncpa %s1314, 1

</llo_original>
